<compile_context>
chip_gen: v7x
topology: tpu7x:2x2x1
jax: 0.10.0
libtpu: 0.0.40
codegen_flags: <defaults>
</compile_context>

<pallas_src>
import functools
import math

import jax
import jax.numpy as jnp
from jax.experimental import pallas as pl
from jax.experimental.pallas import tpu as pltpu


# ---------------------------------------------------------------------------
# Kernel
# ---------------------------------------------------------------------------
def cell_kernel(x_ref, c_ref, w1_ref, b1_ref, w2g_ref, w2c_ref, b2g_ref,
                b2c_ref, out_ref, *scratch, bf, hidden, fuse_k):
    x_raw = x_ref[...]                              # (tm, H)
    c_raw = c_ref[...]                              # (tm, H)
    x32 = x_raw.astype(jnp.float32)                 # exact residual path
    x_mx = x_raw.astype(jnp.bfloat16)               # MXU operands (f32 accumulate)
    c_mx = c_raw.astype(jnp.bfloat16)

    # in_linear: cat([x, context], -1) @ W1 + b1
    if fuse_k:
        # Stage the concat into a bf16 VMEM scratch (lane-aligned column halves
        # for H % 128 == 0) and run one K=2H dot -> fills the 256-deep MXU on
        # v6e / v7x.
        xc = scratch[0]
        xc[:, :hidden] = x_mx
        xc[:, hidden:] = c_mx
        h = (jnp.dot(xc[...], w1_ref[...], preferred_element_type=jnp.float32)
             + b1_ref[...])
    else:
        # v5e (128-deep MXU): two K=H dots into the same f32 accumulator,
        # no lane-axis concat.
        h = (jnp.dot(x_mx, w1_ref[:hidden, :], preferred_element_type=jnp.float32)
             + jnp.dot(c_mx, w1_ref[hidden:, :], preferred_element_type=jnp.float32)
             + b1_ref[...])

    h = jnp.maximum(h, 0.0).astype(jnp.bfloat16)    # ReLU; Dropout(0.0) == identity

    # out_linear + epilogue, per branch (caps live f32 vregs to ~one branch):
    # branches = gates*cells + (1-gates)*x  ==  x + gates*(cells - x)
    for j in range(bf):
        sl = slice(j * hidden, (j + 1) * hidden)
        og = (jnp.dot(h, w2g_ref[:, sl], preferred_element_type=jnp.float32)
              + b2g_ref[:, sl])
        oc = (jnp.dot(h, w2c_ref[:, sl], preferred_element_type=jnp.float32)
              + b2c_ref[:, sl])
        gates = jax.nn.sigmoid(og)                  # (tm, H)
        cells = jnp.tanh(oc)                        # activation == tanh
        out_ref[:, sl] = (x32 + gates * (cells - x32)).astype(out_ref.dtype)


# ---------------------------------------------------------------------------
# Host-side policy helpers
# ---------------------------------------------------------------------------
def _tpu_generation():
    """Return (generation tag, TensorCores per chip)."""
    try:
        kind = jax.devices()[0].device_kind.lower()
    except Exception:
        return "unknown", 1
    if "v7" in kind:
        return "v7x", 2          # 2 TensorCores per chip, 64 MiB VMEM per TC
    if "v6" in kind:
        return "v6e", 1
    if "v5e" in kind or "v5 lite" in kind or "v5lite" in kind:
        return "v5e", 1
    return kind, 1


def _choose_tm(m, num_cores):
    """Largest row tile that still leaves >= 2 pipelined grid steps per core."""
    min_steps = 2 * max(num_cores, 1)
    for tm in (512, 256, 128, 64, 32, 16, 8):
        if m % tm == 0 and m // tm >= min_steps:
            return tm
    return m                      # tiny M: single step, pipelining can't help


def _vmem_limit_bytes(gen, tm, hidden, gh, fuse_k):
    ch = 2 * hidden
    weight_bytes = (ch * ch + 2 * ch * gh) * 2            # bf16, single-buffered
    bias_bytes = (ch + 2 * gh) * 4
    tile_bytes = 2 * (2 * tm * hidden * 4) + 2 * (tm * gh * 4)  # x,c,out double-buffered
    scratch_bytes = tm * ch * 2 if fuse_k else 0
    need = weight_bytes + bias_bytes + tile_bytes + scratch_bytes
    headroom = 16 * 1024 * 1024
    # Leave headroom under v7x's 64 MiB physical VMEM; v5e/v6e have 128 MiB.
    cap = 48 * 1024 * 1024 if gen == "v7x" else 100 * 1024 * 1024
    return int(min(max(need + headroom, 32 * 1024 * 1024), cap))


def _const_spec(shape):
    """Constant-operand BlockSpec: same block every step, single-buffered."""
    idx = lambda i: (0, 0)
    try:
        return pl.BlockSpec(shape, idx, pipeline_mode=pl.Buffered(1))
    except TypeError:             # older jax without pipeline_mode kwarg
        return pl.BlockSpec(shape, idx)


# ---------------------------------------------------------------------------
# Wrapper
# ---------------------------------------------------------------------------
def cell_forward(x, context, params, branch_factor, out_dtype=jnp.float32):
    """x, context: (L, B, H) float32. Returns (L, B, branch_factor, H) out_dtype."""
    w1_t, b1, w2g_t, w2c_t, b2g, b2c = params
    L, B, H = x.shape
    M = L * B
    gh = branch_factor * H
    assert M % 8 == 0, "length*batch must be a multiple of 8"

    gen, num_cores = _tpu_generation()
    tm = _choose_tm(M, num_cores)
    # Fused K=2H in_linear dot on 256-deep-MXU parts when the concat columns
    # are lane-aligned; otherwise the split two-dot path.
    fuse_k = gen in ("v6e", "v7x") and (H % 128 == 0)

    xm = x.reshape(M, H)
    cm = context.reshape(M, H)

    scratch_shapes = []
    if fuse_k:
        scratch_shapes.append(pltpu.VMEM((tm, 2 * H), jnp.bfloat16))

    out = pl.pallas_call(
        functools.partial(cell_kernel, bf=branch_factor, hidden=H, fuse_k=fuse_k),
        out_shape=jax.ShapeDtypeStruct((M, gh), out_dtype),
        grid_spec=pltpu.PrefetchScalarGridSpec(
            num_scalar_prefetch=0,
            grid=(M // tm,),
            in_specs=[
                pl.BlockSpec((tm, H), lambda i: (i, 0)),   # x rows (streamed)
                pl.BlockSpec((tm, H), lambda i: (i, 0)),   # context rows (streamed)
                _const_spec((2 * H, 2 * H)),               # W1^T (bf16), resident
                _const_spec((1, 2 * H)),                   # b1 (f32)
                _const_spec((2 * H, gh)),                  # W2^T gates half (bf16)
                _const_spec((2 * H, gh)),                  # W2^T cells half (bf16)
                _const_spec((1, gh)),                      # b2 gates (f32)
                _const_spec((1, gh)),                      # b2 cells (f32)
            ],
            out_specs=pl.BlockSpec((tm, gh), lambda i: (i, 0)),
            scratch_shapes=scratch_shapes,
        ),
        compiler_params=pltpu.CompilerParams(
            dimension_semantics=("parallel",),
            vmem_limit_bytes=_vmem_limit_bytes(gen, tm, H, gh, fuse_k),
        ),
    )(xm, cm, w1_t, b1, w2g_t, w2c_t, b2g, b2c)

    return out.reshape(L, B, branch_factor, H)


# TODO(synk): for large H / branch_factor, add an N-tile grid axis over the gh
# output columns (w2g/w2c blocks of (2H, tn)) before W2 outgrows the v7x VMEM cap.


# ---------------------------------------------------------------------------
# Parameters & references
# ---------------------------------------------------------------------------
def init_params(key, hidden_size, branch_factor):
    """Deterministic xavier-uniform weights matching the PyTorch __init__ shapes,
    stored pre-transposed (W^T), W2 pre-split by gates/cells columns, bf16
    weights / f32 biases."""
    H = hidden_size
    ch = 2 * H                     # cell_hidden_size
    gh = branch_factor * H
    k1, k2, k3, k4 = jax.random.split(key, 4)

    # in_linear: torch weight (ch, 2H); keep W1^T (2H, ch).
    bound1 = math.sqrt(6.0 / (2 * H + ch))
    w1_t = jax.random.uniform(k1, (2 * H, ch), minval=-bound1, maxval=bound1,
                              dtype=jnp.float32).astype(jnp.bfloat16)
    # out_linear: torch weight (2*gh, ch); keep W2^T (ch, 2*gh), split by output half.
    bound2 = math.sqrt(6.0 / (ch + 2 * gh))
    w2_t = jax.random.uniform(k2, (ch, 2 * gh), minval=-bound2, maxval=bound2,
                              dtype=jnp.float32)
    w2g = w2_t[:, :gh].astype(jnp.bfloat16)    # gates columns
    w2c = w2_t[:, gh:].astype(jnp.bfloat16)    # cells columns

    # Torch init zeroes the biases; use small random values here so the bias
    # path is actually exercised by the correctness check.
    b1 = 0.1 * jax.random.normal(k3, (1, ch), dtype=jnp.float32)
    b2 = 0.1 * jax.random.normal(k4, (1, 2 * gh), dtype=jnp.float32)
    b2g = b2[:, :gh]
    b2c = b2[:, gh:]
    return (w1_t, b1, w2g, w2c, b2g, b2c)


def cell_reference_f32(x, context, params, bf):
    """Pure-f32 JAX mirror of the PyTorch forward (module semantics)."""
    w1, b1, w2g, w2c, b2g, b2c = [p.astype(jnp.float32) for p in params]
    L, B, H = x.shape
    xc = jnp.concatenate([x, context], axis=-1)
    h = jnp.maximum(xc @ w1 + b1, 0.0)
    gates = jax.nn.sigmoid(h @ w2g + b2g).reshape(L, B, bf, H)
    cells = jnp.tanh(h @ w2c + b2c).reshape(L, B, bf, H)
    return gates * cells + (1.0 - gates) * x[:, :, None, :]


def cell_reference_mixed(x, context, params, bf):
    """JAX mirror using the kernel's bf16-operand / f32-accumulate precision."""
    w1, b1, w2g, w2c, b2g, b2c = params
    L, B, H = x.shape
    xm = x.reshape(-1, H).astype(jnp.bfloat16)
    cm = context.reshape(-1, H).astype(jnp.bfloat16)
    xc = jnp.concatenate([xm, cm], axis=-1)
    h = jnp.dot(xc, w1, preferred_element_type=jnp.float32) + b1
    h = jnp.maximum(h, 0.0).astype(jnp.bfloat16)
    og = jnp.dot(h, w2g, preferred_element_type=jnp.float32) + b2g
    oc = jnp.dot(h, w2c, preferred_element_type=jnp.float32) + b2c
    gates = jax.nn.sigmoid(og).reshape(L, B, bf, H)
    cells = jnp.tanh(oc).reshape(L, B, bf, H)
    x32 = x[:, :, None, :]
    return x32 + gates * (cells - x32)


# ---------------------------------------------------------------------------
# Demo / correctness check
# ---------------------------------------------------------------------------
if __name__ == "__main__":
    # length, batch, hidden_size, branch_factor.  M = L*B = 256; H=128 makes
    # the output lane width bf*H = 256 (multiple of 128 -> unmasked stores).
    L, B, H, BF = 16, 16, 128, 2

    key = jax.random.PRNGKey(0)
    kx, kc, kp = jax.random.split(key, 3)
    x = jax.random.normal(kx, (L, B, H), dtype=jnp.float32)
    context = jax.random.normal(kc, (L, B, H), dtype=jnp.float32)
    params = init_params(kp, H, BF)

    out = cell_forward(x, context, params, BF)
    out = jax.block_until_ready(out)
    assert out.shape == (L, B, BF, H)

    # Tight check against a reference with the same mixed precision as the kernel.
    ref_mixed = cell_reference_mixed(x, context, params, BF)
    assert jnp.allclose(out, ref_mixed, atol=2e-3, rtol=2e-3), \
        float(jnp.max(jnp.abs(out - ref_mixed)))

    # Loose check against the full-f32 module semantics (bf16 rounding tolerance).
    ref_f32 = cell_reference_f32(x, context, params, BF)
    assert jnp.allclose(out, ref_f32, atol=3e-2, rtol=3e-2), \
        float(jnp.max(jnp.abs(out - ref_f32)))

    print("KERNEL_OK")
</pallas_src>

<mosaic_0001>
module attributes {stable_mosaic.version = 11 : i64} {
  func.func @cell_kernel(%arg0: i32, %arg1: memref<128x128xf32, #tpu.memory_space<vmem>>, %arg2: memref<128x128xf32, #tpu.memory_space<vmem>>, %arg3: memref<256x256xbf16, #tpu.memory_space<vmem>>, %arg4: memref<1x256xf32, #tpu.memory_space<vmem>>, %arg5: memref<256x256xbf16, #tpu.memory_space<vmem>>, %arg6: memref<256x256xbf16, #tpu.memory_space<vmem>>, %arg7: memref<1x256xf32, #tpu.memory_space<vmem>>, %arg8: memref<1x256xf32, #tpu.memory_space<vmem>>, %arg9: memref<128x256xf32, #tpu.memory_space<vmem>>) attributes {dimension_semantics = [#tpu.dimension_semantics<parallel>], iteration_bounds = array<i64: 2>, scalar_prefetch = 0 : i64, scratch_operands = 0 : i64, tpu.core_type = #tpu.core_type<tc>, window_params = [{transform_indices = @transform_0, window_bounds = array<i64: 128, 128>}, {transform_indices = @transform_1, window_bounds = array<i64: 128, 128>}, {pipeline_mode = #tpu.pipeline_mode<synchronous>, transform_indices = @transform_2, window_bounds = array<i64: 256, 256>}, {pipeline_mode = #tpu.pipeline_mode<synchronous>, transform_indices = @transform_3, window_bounds = array<i64: 1, 256>}, {pipeline_mode = #tpu.pipeline_mode<synchronous>, transform_indices = @transform_4, window_bounds = array<i64: 256, 256>}, {pipeline_mode = #tpu.pipeline_mode<synchronous>, transform_indices = @transform_5, window_bounds = array<i64: 256, 256>}, {pipeline_mode = #tpu.pipeline_mode<synchronous>, transform_indices = @transform_6, window_bounds = array<i64: 1, 256>}, {pipeline_mode = #tpu.pipeline_mode<synchronous>, transform_indices = @transform_7, window_bounds = array<i64: 1, 256>}, {transform_indices = @transform_8, window_bounds = array<i64: 128, 256>}]} {
    %c0 = arith.constant 0 : index
    %c0_0 = arith.constant 0 : index
    %0 = vector.load %arg1[%c0, %c0_0] : memref<128x128xf32, #tpu.memory_space<vmem>>, vector<128x128xf32>
    %c0_1 = arith.constant 0 : index
    %c0_2 = arith.constant 0 : index
    %1 = vector.load %arg2[%c0_1, %c0_2] : memref<128x128xf32, #tpu.memory_space<vmem>>, vector<128x128xf32>
    %2 = arith.truncf %0 : vector<128x128xf32> to vector<128x128xbf16>
    %3 = arith.truncf %1 : vector<128x128xf32> to vector<128x128xbf16>
    %c0_3 = arith.constant 0 : index
    %c0_4 = arith.constant 0 : index
    %4 = vector.load %arg3[%c0_3, %c0_4] : memref<256x256xbf16, #tpu.memory_space<vmem>>, vector<128x256xbf16>
    %cst = arith.constant dense<0.000000e+00> : vector<128x256xf32>
    %5 = tpu.matmul %2, %4, %cst {dimension_numbers = #tpu.dot_dimension_numbers<[1], [0], [0], [1], [0, 0, 1, 1], [], []>} : vector<128x128xbf16>, vector<128x256xbf16>, vector<128x256xf32> -> vector<128x256xf32>
    %c128 = arith.constant 128 : index
    %c0_5 = arith.constant 0 : index
    %6 = vector.load %arg3[%c128, %c0_5] : memref<256x256xbf16, #tpu.memory_space<vmem>>, vector<128x256xbf16>
    %cst_6 = arith.constant dense<0.000000e+00> : vector<128x256xf32>
    %7 = tpu.matmul %3, %6, %cst_6 {dimension_numbers = #tpu.dot_dimension_numbers<[1], [0], [0], [1], [0, 0, 1, 1], [], []>} : vector<128x128xbf16>, vector<128x256xbf16>, vector<128x256xf32> -> vector<128x256xf32>
    %8 = arith.addf %5, %7 : vector<128x256xf32>
    %c0_7 = arith.constant 0 : index
    %c0_8 = arith.constant 0 : index
    %9 = vector.load %arg4[%c0_7, %c0_8] : memref<1x256xf32, #tpu.memory_space<vmem>>, vector<1x256xf32>
    %10 = vector.broadcast %9 : vector<1x256xf32> to vector<128x256xf32>
    %11 = arith.addf %8, %10 : vector<128x256xf32>
    %cst_9 = arith.constant 0.000000e+00 : f32
    %12 = vector.broadcast %cst_9 : f32 to vector<128x256xf32>
    %13 = arith.maximumf %11, %12 : vector<128x256xf32>
    %14 = arith.truncf %13 : vector<128x256xf32> to vector<128x256xbf16>
    %c0_10 = arith.constant 0 : index
    %c0_11 = arith.constant 0 : index
    %15 = vector.load %arg5[%c0_10, %c0_11] : memref<256x256xbf16, #tpu.memory_space<vmem>>, vector<256x128xbf16>
    %cst_12 = arith.constant dense<0.000000e+00> : vector<128x128xf32>
    %16 = tpu.matmul %14, %15, %cst_12 {dimension_numbers = #tpu.dot_dimension_numbers<[1], [0], [0], [1], [0, 0, 1, 1], [], []>} : vector<128x256xbf16>, vector<256x128xbf16>, vector<128x128xf32> -> vector<128x128xf32>
    %c0_13 = arith.constant 0 : index
    %c0_14 = arith.constant 0 : index
    %17 = vector.load %arg7[%c0_13, %c0_14] : memref<1x256xf32, #tpu.memory_space<vmem>>, vector<1x128xf32>
    %18 = vector.broadcast %17 : vector<1x128xf32> to vector<128x128xf32>
    %19 = arith.addf %16, %18 : vector<128x128xf32>
    %c0_15 = arith.constant 0 : index
    %c0_16 = arith.constant 0 : index
    %20 = vector.load %arg6[%c0_15, %c0_16] : memref<256x256xbf16, #tpu.memory_space<vmem>>, vector<256x128xbf16>
    %cst_17 = arith.constant dense<0.000000e+00> : vector<128x128xf32>
    %21 = tpu.matmul %14, %20, %cst_17 {dimension_numbers = #tpu.dot_dimension_numbers<[1], [0], [0], [1], [0, 0, 1, 1], [], []>} : vector<128x256xbf16>, vector<256x128xbf16>, vector<128x128xf32> -> vector<128x128xf32>
    %c0_18 = arith.constant 0 : index
    %c0_19 = arith.constant 0 : index
    %22 = vector.load %arg8[%c0_18, %c0_19] : memref<1x256xf32, #tpu.memory_space<vmem>>, vector<1x128xf32>
    %23 = vector.broadcast %22 : vector<1x128xf32> to vector<128x128xf32>
    %24 = arith.addf %21, %23 : vector<128x128xf32>
    %25 = arith.negf %19 : vector<128x128xf32>
    %26 = math.exp %25 : vector<128x128xf32>
    %cst_20 = arith.constant 1.000000e+00 : f32
    %27 = vector.broadcast %cst_20 : f32 to vector<128x128xf32>
    %28 = arith.addf %27, %26 : vector<128x128xf32>
    %29 = arith.divf %27, %28 : vector<128x128xf32>
    %30 = math.tanh %24 : vector<128x128xf32>
    %31 = arith.subf %30, %0 : vector<128x128xf32>
    %32 = arith.mulf %29, %31 : vector<128x128xf32>
    %33 = arith.addf %0, %32 : vector<128x128xf32>
    %c0_21 = arith.constant 0 : index
    %c0_22 = arith.constant 0 : index
    %34 = vector.load %arg9[%c0_21, %c0_22] : memref<128x256xf32, #tpu.memory_space<vmem>>, vector<128x128xf32>
    tpu.vector_store %arg9[%c0_21, %c0_22], %33 {strides = array<i32>} : memref<128x256xf32, #tpu.memory_space<vmem>>, vector<128x128xf32>,
    %c0_23 = arith.constant 0 : index
    %c128_24 = arith.constant 128 : index
    %35 = vector.load %arg5[%c0_23, %c128_24] : memref<256x256xbf16, #tpu.memory_space<vmem>>, vector<256x128xbf16>
    %cst_25 = arith.constant dense<0.000000e+00> : vector<128x128xf32>
    %36 = tpu.matmul %14, %35, %cst_25 {dimension_numbers = #tpu.dot_dimension_numbers<[1], [0], [0], [1], [0, 0, 1, 1], [], []>} : vector<128x256xbf16>, vector<256x128xbf16>, vector<128x128xf32> -> vector<128x128xf32>
    %c0_26 = arith.constant 0 : index
    %c128_27 = arith.constant 128 : index
    %37 = vector.load %arg7[%c0_26, %c128_27] : memref<1x256xf32, #tpu.memory_space<vmem>>, vector<1x128xf32>
    %38 = vector.broadcast %37 : vector<1x128xf32> to vector<128x128xf32>
    %39 = arith.addf %36, %38 : vector<128x128xf32>
    %c0_28 = arith.constant 0 : index
    %c128_29 = arith.constant 128 : index
    %40 = vector.load %arg6[%c0_28, %c128_29] : memref<256x256xbf16, #tpu.memory_space<vmem>>, vector<256x128xbf16>
    %cst_30 = arith.constant dense<0.000000e+00> : vector<128x128xf32>
    %41 = tpu.matmul %14, %40, %cst_30 {dimension_numbers = #tpu.dot_dimension_numbers<[1], [0], [0], [1], [0, 0, 1, 1], [], []>} : vector<128x256xbf16>, vector<256x128xbf16>, vector<128x128xf32> -> vector<128x128xf32>
    %c0_31 = arith.constant 0 : index
    %c128_32 = arith.constant 128 : index
    %42 = vector.load %arg8[%c0_31, %c128_32] : memref<1x256xf32, #tpu.memory_space<vmem>>, vector<1x128xf32>
    %43 = vector.broadcast %42 : vector<1x128xf32> to vector<128x128xf32>
    %44 = arith.addf %41, %43 : vector<128x128xf32>
    %45 = arith.negf %39 : vector<128x128xf32>
    %46 = math.exp %45 : vector<128x128xf32>
    %cst_33 = arith.constant 1.000000e+00 : f32
    %47 = vector.broadcast %cst_33 : f32 to vector<128x128xf32>
    %48 = arith.addf %47, %46 : vector<128x128xf32>
    %49 = arith.divf %47, %48 : vector<128x128xf32>
    %50 = math.tanh %44 : vector<128x128xf32>
    %51 = arith.subf %50, %0 : vector<128x128xf32>
    %52 = arith.mulf %49, %51 : vector<128x128xf32>
    %53 = arith.addf %0, %52 : vector<128x128xf32>
    %c0_34 = arith.constant 0 : index
    %c128_35 = arith.constant 128 : index
    %54 = vector.load %arg9[%c0_34, %c128_35] : memref<128x256xf32, #tpu.memory_space<vmem>>, vector<128x128xf32>
    tpu.vector_store %arg9[%c0_34, %c128_35], %53 {strides = array<i32>} : memref<128x256xf32, #tpu.memory_space<vmem>>, vector<128x128xf32>,
    return
  }
  func.func @transform_0(%arg0: i32) -> (i32, i32) {
    %c0_i32 = arith.constant 0 : i32
    %c0_i32_0 = arith.constant 0 : i32
    return %arg0, %c0_i32 : i32, i32
  }
  func.func @transform_1(%arg0: i32) -> (i32, i32) {
    %c0_i32 = arith.constant 0 : i32
    %c0_i32_0 = arith.constant 0 : i32
    return %arg0, %c0_i32 : i32, i32
  }
  func.func @transform_2(%arg0: i32) -> (i32, i32) {
    %c0_i32 = arith.constant 0 : i32
    %c0_i32_0 = arith.constant 0 : i32
    %c0_i32_1 = arith.constant 0 : i32
    return %c0_i32, %c0_i32_0 : i32, i32
  }
  func.func @transform_3(%arg0: i32) -> (i32, i32) {
    %c0_i32 = arith.constant 0 : i32
    %c0_i32_0 = arith.constant 0 : i32
    %c0_i32_1 = arith.constant 0 : i32
    return %c0_i32, %c0_i32_0 : i32, i32
  }
  func.func @transform_4(%arg0: i32) -> (i32, i32) {
    %c0_i32 = arith.constant 0 : i32
    %c0_i32_0 = arith.constant 0 : i32
    %c0_i32_1 = arith.constant 0 : i32
    return %c0_i32, %c0_i32_0 : i32, i32
  }
  func.func @transform_5(%arg0: i32) -> (i32, i32) {
    %c0_i32 = arith.constant 0 : i32
    %c0_i32_0 = arith.constant 0 : i32
    %c0_i32_1 = arith.constant 0 : i32
    return %c0_i32, %c0_i32_0 : i32, i32
  }
  func.func @transform_6(%arg0: i32) -> (i32, i32) {
    %c0_i32 = arith.constant 0 : i32
    %c0_i32_0 = arith.constant 0 : i32
    %c0_i32_1 = arith.constant 0 : i32
    return %c0_i32, %c0_i32_0 : i32, i32
  }
  func.func @transform_7(%arg0: i32) -> (i32, i32) {
    %c0_i32 = arith.constant 0 : i32
    %c0_i32_0 = arith.constant 0 : i32
    %c0_i32_1 = arith.constant 0 : i32
    return %c0_i32, %c0_i32_0 : i32, i32
  }
  func.func @transform_8(%arg0: i32) -> (i32, i32) {
    %c0_i32 = arith.constant 0 : i32
    %c0_i32_0 = arith.constant 0 : i32
    return %arg0, %c0_i32 : i32, i32
  }
}

</mosaic_0001>

<llo_original>
// kernel: tpu_custom_call.1
$region0: #{tpu_custom_call.1}
  #allocation0 [shape = 'u32[]', space=smem, size = 0x4, offset = 0x4, fixed_abs, tag = 'smem constant byte address 0x4 - core index']
  #allocation1 [shape = 'u32[144,128]{1,0:T(1,128)}', space=vmem, size = 0x12000, scoped, tag = 'internal scratch']
  %s0 = inlined_call_operand.hbm [shape: f32[256,128], index: 0, kind: input, shape index: {}]
  %s1 = inlined_call_operand.hbm [shape: f32[256,128], index: 1, kind: input, shape index: {}]
  %s2 = inlined_call_operand.hbm [shape: bf16[256,256], index: 2, kind: input, shape index: {}]
  %s3 = inlined_call_operand.vmem [shape: f32[1,256], index: 3, kind: input, shape index: {}]
  %s4 = inlined_call_operand.hbm [shape: bf16[256,256], index: 4, kind: input, shape index: {}]
  %s5 = inlined_call_operand.hbm [shape: bf16[256,256], index: 5, kind: input, shape index: {}]
  %s6 = inlined_call_operand.vmem [shape: f32[1,256], index: 6, kind: input, shape index: {}]
  %s7 = inlined_call_operand.vmem [shape: f32[1,256], index: 7, kind: input, shape index: {}]
  %s8 = inlined_call_operand.hbm [shape: f32[256,256], index: 8, kind: output, shape index: {}]
  %s9 = sld [smem:[#allocation0]]
  $region85: #{tpu_custom_call.1} parent=0
    _
  %s11 = ssub.s32 1, %s9
  %s12 = scalar_select 0, %s11, %s9
  $region1: #{tpu_custom_call.1} parent=0
    #allocation2 [shape = 'u8[131072]{0}', space=vmem, size = 0x20000, scoped, tag = 'input window, operand 0']
    #allocation3 [shape = 's32[2]{0}', space=sflag, size = 0x8, scoped, tag = 'scoped memory for tpu_custom_call.1']
    #allocation4 [shape = 's32[2]{0}', space=sflag, size = 0x8, scoped, tag = 'scoped memory for tpu_custom_call.1']
    #allocation5 [shape = 'u8[131072]{0}', space=vmem, size = 0x20000, scoped, tag = 'input window, operand 1']
    #allocation6 [shape = 's32[2]{0}', space=sflag, size = 0x8, scoped, tag = 'scoped memory for tpu_custom_call.1']
    #allocation7 [shape = 'u8[131072]{0}', space=vmem, size = 0x20000, scoped, tag = 'input window, operand 2, single buffered']
    #allocation8 [shape = 'u8[131072]{0}', space=vmem, size = 0x20000, scoped, tag = 'input window, operand 4, single buffered']
    #allocation9 [shape = 's32[1]{0}', space=sflag, size = 0x4, scoped, tag = 'scoped memory for tpu_custom_call.1']
    #allocation10 [shape = 'u8[131072]{0}', space=vmem, size = 0x20000, scoped, tag = 'input window, operand 5, single buffered']
    #allocation11 [shape = 'u8[262144]{0}', space=vmem, size = 0x40000, scoped, tag = 'output window, operand 0']
    %13 = vsyncpa [#allocation3], 0
    %s14 = scalar_lea.sflag [#allocation3], 1
    %15 = vsyncpa %s14, 0
    %16 = vsyncpa [#allocation6], 0
    %s17 = scalar_lea.sflag [#allocation6], 1
    %18 = vsyncpa %s17, 0
    %19 = vsyncpa [#allocation9], 0
    %20 = vsyncpa [#allocation4], 0
    %s21 = scalar_lea.sflag [#allocation4], 1
    %22 = vsyncpa %s21, 0
    loop: start=0, step=1, limit=4
    $region2: #{tpu_custom_call.1} parent=1 // loop_pre_header
      _
    $region3: #{tpu_custom_call.1} parent=1 // loop_header
      %s24 = sphi 0, %s28
      %p25 = scmp.ge.s32.totalorder %s24, 4
      %s34 = sphi 0, %s36
      %s37 = sphi 0, %s34
      %s38 = sphi 0, %s37
      %s54 = sphi 0, %s38
      %s60 = sphi 0, %s62
      %s63 = sphi 0, %s60
      %s64 = sphi 0, %s63
      %s80 = sphi 0, %s64
      %s84 = sphi 0, %s84
      %s86 = sphi 0, %s84
      %s87 = sphi 0, %s86
      %s101 = sphi 0, %s87
      %s105 = sphi 0, %s105
      %s107 = sphi 0, %s105
      %s108 = sphi 0, %s107
      %s122 = sphi 0, %s108
      %s126 = sphi 0, %s126
      %s128 = sphi 0, %s126
      %s129 = sphi 0, %s128
      %s143 = sphi 0, %s129
      %s147 = sphi 0, %s147
      %s149 = sphi 0, %s147
      %s150 = sphi 0, %s149
      %s164 = sphi 0, %s150
      %s168 = sphi 0, %s168
      %s170 = sphi 0, %s168
      %s171 = sphi 0, %s170
      %s185 = sphi 0, %s171
      %s189 = sphi 0, %s189
      %s191 = sphi 0, %s189
      %s192 = sphi 0, %s191
      %s206 = sphi 0, %s192
      %s212 = sphi 0, %s214
      %s215 = sphi 0, %s212
      %s216 = sphi 0, %s215
      %s232 = sphi 0, %s216
    $region4: #{tpu_custom_call.1} parent=1 // loop_header_branch
      %27 = sbr.rel (%p25) target = $region8
    $region5: #{tpu_custom_call.1} parent=1 // loop_body
      %s29 = ssub.s32 %s24, 1
      %s30 = ssub.s32 %s24, 2
      %s31 = sadd.s32 %s24, 1
      %s32 = ssub.s32 %s24, %s31
      %p33 = scmp.eq.s32.totalorder %s32, 0
      %s35 = sadd.s32 %s34, 1
      %s36 = scalar_select %p33, %s34, %s35
      %p39 = pneg %p33
      %p40 = scmp.eq.s32.totalorder %s24, 1
      %p41 = por %p39, %p40
      %p42 = scmp.ne.s32.totalorder %s34, %s37
      %p43 = scmp.eq.s32.totalorder %s24, 0
      %p44 = por %p42, %p43
      %p45 = scmp.ne.s32.totalorder %s34, %s37
      %p46 = scmp.eq.s32.totalorder %s29, 1
      %p47 = por %p45, %p46
      %p48 = scmp.ne.s32.totalorder %s37, %s38
      %p49 = scmp.eq.s32.totalorder %s29, 0
      %p50 = por %p48, %p49
      %p51 = scmp.ne.s32.totalorder %s37, %s38
      %p52 = scmp.eq.s32.totalorder %s30, 1
      %p53 = por %p51, %p52
      %p55 = scmp.ne.s32.totalorder %s38, %s54
      %p56 = scmp.eq.s32.totalorder %s30, 0
      %p57 = por %p55, %p56
      %s58 = ssub.s32 %s24, %s31
      %p59 = scmp.eq.s32.totalorder %s58, 0
      %s61 = sadd.s32 %s60, 1
      %s62 = scalar_select %p59, %s60, %s61
      %p65 = pneg %p59
      %p66 = scmp.eq.s32.totalorder %s24, 1
      %p67 = por %p65, %p66
      %p68 = scmp.ne.s32.totalorder %s60, %s63
      %p69 = scmp.eq.s32.totalorder %s24, 0
      %p70 = por %p68, %p69
      %p71 = scmp.ne.s32.totalorder %s60, %s63
      %p72 = scmp.eq.s32.totalorder %s29, 1
      %p73 = por %p71, %p72
      %p74 = scmp.ne.s32.totalorder %s63, %s64
      %p75 = scmp.eq.s32.totalorder %s29, 0
      %p76 = por %p74, %p75
      %p77 = scmp.ne.s32.totalorder %s63, %s64
      %p78 = scmp.eq.s32.totalorder %s30, 1
      %p79 = por %p77, %p78
      %p81 = scmp.ne.s32.totalorder %s64, %s80
      %p82 = scmp.eq.s32.totalorder %s30, 0
      %p83 = por %p81, %p82
      %s85 = sadd.s32 %s84, 1
      %p88 = scmp.eq.s32.totalorder %s24, 1
      %p89 = scmp.ne.s32.totalorder %s84, %s86
      %p90 = scmp.eq.s32.totalorder %s24, 0
      %p91 = por %p89, %p90
      %p92 = scmp.ne.s32.totalorder %s84, %s86
      %p93 = scmp.eq.s32.totalorder %s29, 1
      %p94 = por %p92, %p93
      %p95 = scmp.ne.s32.totalorder %s86, %s87
      %p96 = scmp.eq.s32.totalorder %s29, 0
      %p97 = por %p95, %p96
      %p98 = scmp.ne.s32.totalorder %s86, %s87
      %p99 = scmp.eq.s32.totalorder %s30, 1
      %p100 = por %p98, %p99
      %p102 = scmp.ne.s32.totalorder %s87, %s101
      %p103 = scmp.eq.s32.totalorder %s30, 0
      %p104 = por %p102, %p103
      %s106 = sadd.s32 %s105, 1
      %p109 = scmp.eq.s32.totalorder %s24, 1
      %p110 = scmp.ne.s32.totalorder %s105, %s107
      %p111 = scmp.eq.s32.totalorder %s24, 0
      %p112 = por %p110, %p111
      %p113 = scmp.ne.s32.totalorder %s105, %s107
      %p114 = scmp.eq.s32.totalorder %s29, 1
      %p115 = por %p113, %p114
      %p116 = scmp.ne.s32.totalorder %s107, %s108
      %p117 = scmp.eq.s32.totalorder %s29, 0
      %p118 = por %p116, %p117
      %p119 = scmp.ne.s32.totalorder %s107, %s108
      %p120 = scmp.eq.s32.totalorder %s30, 1
      %p121 = por %p119, %p120
      %p123 = scmp.ne.s32.totalorder %s108, %s122
      %p124 = scmp.eq.s32.totalorder %s30, 0
      %p125 = por %p123, %p124
      %s127 = sadd.s32 %s126, 1
      %p130 = scmp.eq.s32.totalorder %s24, 1
      %p131 = scmp.ne.s32.totalorder %s126, %s128
      %p132 = scmp.eq.s32.totalorder %s24, 0
      %p133 = por %p131, %p132
      %p134 = scmp.ne.s32.totalorder %s126, %s128
      %p135 = scmp.eq.s32.totalorder %s29, 1
      %p136 = por %p134, %p135
      %p137 = scmp.ne.s32.totalorder %s128, %s129
      %p138 = scmp.eq.s32.totalorder %s29, 0
      %p139 = por %p137, %p138
      %p140 = scmp.ne.s32.totalorder %s128, %s129
      %p141 = scmp.eq.s32.totalorder %s30, 1
      %p142 = por %p140, %p141
      %p144 = scmp.ne.s32.totalorder %s129, %s143
      %p145 = scmp.eq.s32.totalorder %s30, 0
      %p146 = por %p144, %p145
      %s148 = sadd.s32 %s147, 1
      %p151 = scmp.eq.s32.totalorder %s24, 1
      %p152 = scmp.ne.s32.totalorder %s147, %s149
      %p153 = scmp.eq.s32.totalorder %s24, 0
      %p154 = por %p152, %p153
      %p155 = scmp.ne.s32.totalorder %s147, %s149
      %p156 = scmp.eq.s32.totalorder %s29, 1
      %p157 = por %p155, %p156
      %p158 = scmp.ne.s32.totalorder %s149, %s150
      %p159 = scmp.eq.s32.totalorder %s29, 0
      %p160 = por %p158, %p159
      %p161 = scmp.ne.s32.totalorder %s149, %s150
      %p162 = scmp.eq.s32.totalorder %s30, 1
      %p163 = por %p161, %p162
      %p165 = scmp.ne.s32.totalorder %s150, %s164
      %p166 = scmp.eq.s32.totalorder %s30, 0
      %p167 = por %p165, %p166
      %s169 = sadd.s32 %s168, 1
      %p172 = scmp.eq.s32.totalorder %s24, 1
      %p173 = scmp.ne.s32.totalorder %s168, %s170
      %p174 = scmp.eq.s32.totalorder %s24, 0
      %p175 = por %p173, %p174
      %p176 = scmp.ne.s32.totalorder %s168, %s170
      %p177 = scmp.eq.s32.totalorder %s29, 1
      %p178 = por %p176, %p177
      %p179 = scmp.ne.s32.totalorder %s170, %s171
      %p180 = scmp.eq.s32.totalorder %s29, 0
      %p181 = por %p179, %p180
      %p182 = scmp.ne.s32.totalorder %s170, %s171
      %p183 = scmp.eq.s32.totalorder %s30, 1
      %p184 = por %p182, %p183
      %p186 = scmp.ne.s32.totalorder %s171, %s185
      %p187 = scmp.eq.s32.totalorder %s30, 0
      %p188 = por %p186, %p187
      %s190 = sadd.s32 %s189, 1
      %p193 = scmp.eq.s32.totalorder %s24, 1
      %p194 = scmp.ne.s32.totalorder %s189, %s191
      %p195 = scmp.eq.s32.totalorder %s24, 0
      %p196 = por %p194, %p195
      %p197 = scmp.ne.s32.totalorder %s189, %s191
      %p198 = scmp.eq.s32.totalorder %s29, 1
      %p199 = por %p197, %p198
      %p200 = scmp.ne.s32.totalorder %s191, %s192
      %p201 = scmp.eq.s32.totalorder %s29, 0
      %p202 = por %p200, %p201
      %p203 = scmp.ne.s32.totalorder %s191, %s192
      %p204 = scmp.eq.s32.totalorder %s30, 1
      %p205 = por %p203, %p204
      %p207 = scmp.ne.s32.totalorder %s192, %s206
      %p208 = scmp.eq.s32.totalorder %s30, 0
      %p209 = por %p207, %p208
      %s210 = ssub.s32 %s24, %s31
      %p211 = scmp.eq.s32.totalorder %s210, 0
      %s213 = sadd.s32 %s212, 1
      %s214 = scalar_select %p211, %s212, %s213
      %p217 = pneg %p211
      %p218 = scmp.eq.s32.totalorder %s24, 1
      %p219 = por %p217, %p218
      %p220 = scmp.ne.s32.totalorder %s212, %s215
      %p221 = scmp.eq.s32.totalorder %s24, 0
      %p222 = por %p220, %p221
      %p223 = scmp.ne.s32.totalorder %s212, %s215
      %p224 = scmp.eq.s32.totalorder %s29, 1
      %p225 = por %p223, %p224
      %p226 = scmp.ne.s32.totalorder %s215, %s216
      %p227 = scmp.eq.s32.totalorder %s29, 0
      %p228 = por %p226, %p227
      %p229 = scmp.ne.s32.totalorder %s215, %s216
      %p230 = scmp.eq.s32.totalorder %s30, 1
      %p231 = por %p229, %p230
      %p233 = scmp.ne.s32.totalorder %s216, %s232
      %p234 = scmp.eq.s32.totalorder %s30, 0
      %p235 = por %p233, %p234
      %p236 = scmp.le.s32.totalorder 1, %s24
      %p237 = scmp.lt.s32.totalorder %s24, 3
      %p238 = pnand %p236, %p237
      %p239 = pneg %p238
      // Predicated region
      $region9: #{tpu_custom_call.1} parent=5 // pred_check
        _
      $region10: #{tpu_custom_call.1} parent=5 // pred_check_branch
        %241 = sbr.rel (%p238) target = $region12
      $region11: #{tpu_custom_call.1} parent=5 // pred_region
        %s242 = ssub.s32 %s24, 1
        // Predicated region
        $region13: #{tpu_custom_call.1} parent=11 // pred_check
          %p243 = pneg %p97
        $region14: #{tpu_custom_call.1} parent=11 // pred_check_branch
          %245 = sbr.rel (%p243) target = $region16
        $region15: #{tpu_custom_call.1} parent=11 // pred_region
          %s247 = ssub.s32 4096, 4096
          %248 = vsyncadd [#allocation6], %s247
          %s249 = sshll.u32 [#allocation7], 4
          %s250 = int_to_ptr.vmem [resolvable:$true] %s249
          %255 = dma.hbm_to_vmem [thread:$0]  %s2, 4096, %s250, [#allocation6], 128, 128, 8
        $region16: #{tpu_custom_call.1} parent=11 // pred_fallthru
          _
        // Predicated region
        $region17: #{tpu_custom_call.1} parent=11 // pred_check
          %p256 = pneg %p118
        $region18: #{tpu_custom_call.1} parent=11 // pred_check_branch
          %258 = sbr.rel (%p256) target = $region20
        $region19: #{tpu_custom_call.1} parent=11 // pred_region
          _
        $region20: #{tpu_custom_call.1} parent=11 // pred_fallthru
          _
        // Predicated region
        $region21: #{tpu_custom_call.1} parent=11 // pred_check
          %p259 = pneg %p139
        $region22: #{tpu_custom_call.1} parent=11 // pred_check_branch
          %261 = sbr.rel (%p259) target = $region24
        $region23: #{tpu_custom_call.1} parent=11 // pred_region
          %s263 = ssub.s32 4096, 4096
          %264 = vsyncadd [#allocation9], %s263
          %s265 = sshll.u32 [#allocation8], 4
          %s266 = int_to_ptr.vmem [resolvable:$true] %s265
          %271 = dma.hbm_to_vmem [thread:$0]  %s4, 4096, %s266, [#allocation9], 128, 128, 8
        $region24: #{tpu_custom_call.1} parent=11 // pred_fallthru
          _
        // Predicated region
        $region25: #{tpu_custom_call.1} parent=11 // pred_check
          %p272 = pneg %p160
        $region26: #{tpu_custom_call.1} parent=11 // pred_check_branch
          %274 = sbr.rel (%p272) target = $region28
        $region27: #{tpu_custom_call.1} parent=11 // pred_region
          %s276 = ssub.s32 4096, 4096
          %277 = vsyncadd [#allocation9], %s276
          %s278 = sshll.u32 [#allocation10], 4
          %s279 = int_to_ptr.vmem [resolvable:$true] %s278
          %284 = dma.hbm_to_vmem [thread:$0]  %s5, 4096, %s279, [#allocation9], 128, 128, 8
        $region28: #{tpu_custom_call.1} parent=11 // pred_fallthru
          _
        // Predicated region
        $region29: #{tpu_custom_call.1} parent=11 // pred_check
          %p285 = pneg %p181
        $region30: #{tpu_custom_call.1} parent=11 // pred_check_branch
          %287 = sbr.rel (%p285) target = $region32
        $region31: #{tpu_custom_call.1} parent=11 // pred_region
          _
        $region32: #{tpu_custom_call.1} parent=11 // pred_fallthru
          _
        // Predicated region
        $region33: #{tpu_custom_call.1} parent=11 // pred_check
          %p288 = pneg %p202
        $region34: #{tpu_custom_call.1} parent=11 // pred_check_branch
          %290 = sbr.rel (%p288) target = $region36
        $region35: #{tpu_custom_call.1} parent=11 // pred_region
          _
        $region36: #{tpu_custom_call.1} parent=11 // pred_fallthru
          _
      $region12: #{tpu_custom_call.1} parent=5 // pred_fallthru
        _
      %p291 = scmp.lt.s32.totalorder %s24, 2
      // Predicated region
      $region37: #{tpu_custom_call.1} parent=5 // pred_check
        %p292 = pneg %p291
      $region38: #{tpu_custom_call.1} parent=5 // pred_check_branch
        %294 = sbr.rel (%p292) target = $region40
      $region39: #{tpu_custom_call.1} parent=5 // pred_region
        // Predicated region
        $region41: #{tpu_custom_call.1} parent=39 // pred_check
          %p295 = pneg %p44
        $region42: #{tpu_custom_call.1} parent=39 // pred_check_branch
          %297 = sbr.rel (%p295) target = $region44
        $region43: #{tpu_custom_call.1} parent=39 // pred_region
          %s298 = sand.u32 %s34, 1
          %s299 = scalar_lea.sflag [#allocation3], %s298
          %s300 = sand.u32 %s34, 1
          %s301 = smul.addr %s300, 128
          %s302 = scalar_lea.vmem [#allocation2], %s301
          %s303 = smul.u32 16, %s24
          %s305 = ssub.s32 2048, 2048
          %306 = vsyncadd %s299, %s305
          %s307 = smul.addr %s303, 128
          %s308 = scalar_lea.hbm %s0, %s307
          %s309 = sshll.u32 %s302, 4
          %s310 = int_to_ptr.vmem [resolvable:$true] %s309
          %315 = dma.hbm_to_vmem [thread:$0]  %s308, 2048, %s310, %s299, 128, 128, 8
        $region44: #{tpu_custom_call.1} parent=39 // pred_fallthru
          _
        // Predicated region
        $region45: #{tpu_custom_call.1} parent=39 // pred_check
          %p316 = pneg %p70
        $region46: #{tpu_custom_call.1} parent=39 // pred_check_branch
          %318 = sbr.rel (%p316) target = $region48
        $region47: #{tpu_custom_call.1} parent=39 // pred_region
          %s319 = sand.u32 %s24, 1
          %s320 = scalar_lea.sflag [#allocation6], %s319
          %s321 = sand.u32 %s60, 1
          %s322 = smul.addr %s321, 128
          %s323 = scalar_lea.vmem [#allocation5], %s322
          %s324 = smul.u32 16, %s24
          %s326 = ssub.s32 2048, 2048
          %327 = vsyncadd %s320, %s326
          %s328 = smul.addr %s324, 128
          %s329 = scalar_lea.hbm %s1, %s328
          %s330 = sshll.u32 %s323, 4
          %s331 = int_to_ptr.vmem [resolvable:$true] %s330
          %336 = dma.hbm_to_vmem [thread:$0]  %s329, 2048, %s331, %s320, 128, 128, 8
        $region48: #{tpu_custom_call.1} parent=39 // pred_fallthru
          _
      $region40: #{tpu_custom_call.1} parent=5 // pred_fallthru
        _
      %p337 = scmp.le.s32.totalorder 1, %s24
      %p338 = scmp.lt.s32.totalorder %s24, 3
      %p339 = pnand %p337, %p338
      %p340 = pneg %p339
      // Predicated region
      $region49: #{tpu_custom_call.1} parent=5 // pred_check
        _
      $region50: #{tpu_custom_call.1} parent=5 // pred_check_branch
        %342 = sbr.rel (%p339) target = $region52
      $region51: #{tpu_custom_call.1} parent=5 // pred_region
        %s343 = ssub.s32 %s24, 1
        %s344 = sand.u32 %s37, 1
        %s345 = scalar_lea.sflag [#allocation3], %s344
        %s346 = sand.u32 %s37, 1
        %s347 = smul.addr %s346, 128
        %s348 = scalar_lea.vmem [#allocation2], %s347
        // Predicated region
        $region53: #{tpu_custom_call.1} parent=51 // pred_check
          %p349 = pneg %p50
        $region54: #{tpu_custom_call.1} parent=51 // pred_check_branch
          %351 = sbr.rel (%p349) target = $region56
        $region55: #{tpu_custom_call.1} parent=51 // pred_region
          %352 = dma.done %s345, 2048
        $region56: #{tpu_custom_call.1} parent=51 // pred_fallthru
          _
        %s353 = sand.u32 %s29, 1
        %s354 = scalar_lea.sflag [#allocation6], %s353
        %s355 = sand.u32 %s63, 1
        %s356 = smul.addr %s355, 128
        %s357 = scalar_lea.vmem [#allocation5], %s356
        // Predicated region
        $region57: #{tpu_custom_call.1} parent=51 // pred_check
          %p358 = pneg %p76
        $region58: #{tpu_custom_call.1} parent=51 // pred_check_branch
          %360 = sbr.rel (%p358) target = $region60
        $region59: #{tpu_custom_call.1} parent=51 // pred_region
          %361 = dma.done %s354, 2048
        $region60: #{tpu_custom_call.1} parent=51 // pred_fallthru
          _
        // Predicated region
        $region61: #{tpu_custom_call.1} parent=51 // pred_check
          %p362 = pneg %p97
        $region62: #{tpu_custom_call.1} parent=51 // pred_check_branch
          %364 = sbr.rel (%p362) target = $region64
        $region63: #{tpu_custom_call.1} parent=51 // pred_region
          %365 = dma.done [#allocation6], 4096
        $region64: #{tpu_custom_call.1} parent=51 // pred_fallthru
          _
        // Predicated region
        $region65: #{tpu_custom_call.1} parent=51 // pred_check
          %p366 = pneg %p139
        $region66: #{tpu_custom_call.1} parent=51 // pred_check_branch
          %368 = sbr.rel (%p366) target = $region68
        $region67: #{tpu_custom_call.1} parent=51 // pred_region
          %369 = dma.done [#allocation9], 4096
        $region68: #{tpu_custom_call.1} parent=51 // pred_fallthru
          _
        // Predicated region
        $region69: #{tpu_custom_call.1} parent=51 // pred_check
          %p370 = pneg %p160
        $region70: #{tpu_custom_call.1} parent=51 // pred_check_branch
          %372 = sbr.rel (%p370) target = $region72
        $region71: #{tpu_custom_call.1} parent=51 // pred_region
          %373 = dma.done [#allocation9], 4096
        $region72: #{tpu_custom_call.1} parent=51 // pred_fallthru
          _
        %s374 = sand.u32 %s37, 1
        %s375 = scalar_lea.sflag [#allocation3], %s374
        %s376 = sand.u32 %s37, 1
        %s377 = smul.addr %s376, 128
        %s378 = scalar_lea.vmem [#allocation2], %s377
        %p379 = pneg %p50
        %p380 = pneg %p47
        %s381 = sand.u32 %s29, 1
        %s382 = scalar_lea.sflag [#allocation6], %s381
        %s383 = sand.u32 %s63, 1
        %s384 = smul.addr %s383, 128
        %s385 = scalar_lea.vmem [#allocation5], %s384
        %p386 = pneg %p76
        %p387 = pneg %p73
        %p388 = pneg %p97
        %p389 = pneg %p94
        %p390 = pneg %p118
        %p391 = pneg %p115
        %p392 = pneg %p139
        %p393 = pneg %p136
        %p394 = pneg %p160
        %p395 = pneg %p157
        %p396 = pneg %p181
        %p397 = pneg %p178
        %p398 = pneg %p202
        %p399 = pneg %p199
        %p400 = pneg %p228
        %p401 = pneg %p225
        %s402 = sand.u32 %s215, 1
        %s403 = scalar_lea.sflag [#allocation4], %s402
        %s404 = sand.u32 %s215, 1
        %s405 = smul.addr %s404, 256
        %s406 = scalar_lea.vmem [#allocation11], %s405
        %s407 = smul.u32 16, %s29
        %s408 = smul.u32 16, %s29
        %s409 = smul.u32 16, %s29
        %v411 = vld [vmem:[%s348] sm:$0xff]
        %v412 = vld [vmem:[%s348 + $0x8] sm:$0xff]
        %v413 = vld [vmem:[%s348 + $0x10] sm:$0xff]
        %v414 = vld [vmem:[%s348 + $0x18] sm:$0xff]
        %v415 = vld [vmem:[%s348 + $0x20] sm:$0xff]
        %v416 = vld [vmem:[%s348 + $0x28] sm:$0xff]
        %v417 = vld [vmem:[%s348 + $0x30] sm:$0xff]
        %v418 = vld [vmem:[%s348 + $0x38] sm:$0xff]
        %v419 = vld [vmem:[%s348 + $0x40] sm:$0xff]
        %v420 = vld [vmem:[%s348 + $0x48] sm:$0xff]
        %v421 = vld [vmem:[%s348 + $0x50] sm:$0xff]
        %v422 = vld [vmem:[%s348 + $0x58] sm:$0xff]
        %v423 = vld [vmem:[%s348 + $0x60] sm:$0xff]
        %v424 = vld [vmem:[%s348 + $0x68] sm:$0xff]
        %v425 = vld [vmem:[%s348 + $0x70] sm:$0xff]
        %v426 = vld [vmem:[%s348 + $0x78] sm:$0xff]
        %v427 = vld [vmem:[%s357] sm:$0xff]
        %v428 = vld [vmem:[%s357 + $0x8] sm:$0xff]
        %v429 = vld [vmem:[%s357 + $0x10] sm:$0xff]
        %v430 = vld [vmem:[%s357 + $0x18] sm:$0xff]
        %v431 = vld [vmem:[%s357 + $0x20] sm:$0xff]
        %v432 = vld [vmem:[%s357 + $0x28] sm:$0xff]
        %v433 = vld [vmem:[%s357 + $0x30] sm:$0xff]
        %v434 = vld [vmem:[%s357 + $0x38] sm:$0xff]
        %v435 = vld [vmem:[%s357 + $0x40] sm:$0xff]
        %v436 = vld [vmem:[%s357 + $0x48] sm:$0xff]
        %v437 = vld [vmem:[%s357 + $0x50] sm:$0xff]
        %v438 = vld [vmem:[%s357 + $0x58] sm:$0xff]
        %v439 = vld [vmem:[%s357 + $0x60] sm:$0xff]
        %v440 = vld [vmem:[%s357 + $0x68] sm:$0xff]
        %v441 = vld [vmem:[%s357 + $0x70] sm:$0xff]
        %v442 = vld [vmem:[%s357 + $0x78] sm:$0xff]
        %v443 = vpack.c.bf16 %v412, %v411
        %v444 = vpack.c.bf16 %v414, %v413
        %v445 = vpack.c.bf16 %v416, %v415
        %v446 = vpack.c.bf16 %v418, %v417
        %v447 = vpack.c.bf16 %v420, %v419
        %v448 = vpack.c.bf16 %v422, %v421
        %v449 = vpack.c.bf16 %v424, %v423
        %v450 = vpack.c.bf16 %v426, %v425
        %v451 = vpack.c.bf16 %v428, %v427
        %v452 = vpack.c.bf16 %v430, %v429
        %v453 = vpack.c.bf16 %v432, %v431
        %v454 = vpack.c.bf16 %v434, %v433
        %v455 = vpack.c.bf16 %v436, %v435
        %v456 = vpack.c.bf16 %v438, %v437
        %v457 = vpack.c.bf16 %v440, %v439
        %v458 = vpack.c.bf16 %v442, %v441
        %v459 = vld [vmem:[#allocation7] sm:$0xff]
        %v460 = vld [vmem:[#allocation7 + $0x8] sm:$0xff]
        %v461 = vld [vmem:[#allocation7 + $0x10] sm:$0xff]
        %v462 = vld [vmem:[#allocation7 + $0x18] sm:$0xff]
        %v463 = vld [vmem:[#allocation7 + $0x20] sm:$0xff]
        %v464 = vld [vmem:[#allocation7 + $0x28] sm:$0xff]
        %v465 = vld [vmem:[#allocation7 + $0x30] sm:$0xff]
        %v466 = vld [vmem:[#allocation7 + $0x38] sm:$0xff]
        %v467 = vld [vmem:[#allocation7 + $0x40] sm:$0xff]
        %v468 = vld [vmem:[#allocation7 + $0x48] sm:$0xff]
        %v469 = vld [vmem:[#allocation7 + $0x50] sm:$0xff]
        %v470 = vld [vmem:[#allocation7 + $0x58] sm:$0xff]
        %v471 = vld [vmem:[#allocation7 + $0x60] sm:$0xff]
        %v472 = vld [vmem:[#allocation7 + $0x68] sm:$0xff]
        %v473 = vld [vmem:[#allocation7 + $0x70] sm:$0xff]
        %v474 = vld [vmem:[#allocation7 + $0x78] sm:$0xff]
        %v475 = vld [vmem:[#allocation7 + $0x80] sm:$0xff]
        %v476 = vld [vmem:[#allocation7 + $0x88] sm:$0xff]
        %v477 = vld [vmem:[#allocation7 + $0x90] sm:$0xff]
        %v478 = vld [vmem:[#allocation7 + $0x98] sm:$0xff]
        %v479 = vld [vmem:[#allocation7 + $0xa0] sm:$0xff]
        %v480 = vld [vmem:[#allocation7 + $0xa8] sm:$0xff]
        %v481 = vld [vmem:[#allocation7 + $0xb0] sm:$0xff]
        %v482 = vld [vmem:[#allocation7 + $0xb8] sm:$0xff]
        %v483 = vld [vmem:[#allocation7 + $0xc0] sm:$0xff]
        %v484 = vld [vmem:[#allocation7 + $0xc8] sm:$0xff]
        %v485 = vld [vmem:[#allocation7 + $0xd0] sm:$0xff]
        %v486 = vld [vmem:[#allocation7 + $0xd8] sm:$0xff]
        %v487 = vld [vmem:[#allocation7 + $0xe0] sm:$0xff]
        %v488 = vld [vmem:[#allocation7 + $0xe8] sm:$0xff]
        %v489 = vld [vmem:[#allocation7 + $0xf0] sm:$0xff]
        %v490 = vld [vmem:[#allocation7 + $0xf8] sm:$0xff]
        %v507 = vunpack.c.l.b16 %v475
        %v508 = vunpack.c.h.b16 %v475
        %v509 = vunpack.c.l.b16 %v476
        %v510 = vunpack.c.h.b16 %v476
        %v511 = vunpack.c.l.b16 %v477
        %v512 = vunpack.c.h.b16 %v477
        %v513 = vunpack.c.l.b16 %v478
        %v514 = vunpack.c.h.b16 %v478
        %v515 = vunpack.c.l.b16 %v479
        %v516 = vunpack.c.h.b16 %v479
        %v517 = vunpack.c.l.b16 %v480
        %v518 = vunpack.c.h.b16 %v480
        %v519 = vunpack.c.l.b16 %v481
        %v520 = vunpack.c.h.b16 %v481
        %v521 = vunpack.c.l.b16 %v482
        %v522 = vunpack.c.h.b16 %v482
        %v523 = vunpack.c.l.b16 %v483
        %v524 = vunpack.c.h.b16 %v483
        %v525 = vunpack.c.l.b16 %v484
        %v526 = vunpack.c.h.b16 %v484
        %v527 = vunpack.c.l.b16 %v485
        %v528 = vunpack.c.h.b16 %v485
        %v529 = vunpack.c.l.b16 %v486
        %v530 = vunpack.c.h.b16 %v486
        %v531 = vunpack.c.l.b16 %v487
        %v532 = vunpack.c.h.b16 %v487
        %v533 = vunpack.c.l.b16 %v488
        %v534 = vunpack.c.h.b16 %v488
        %v535 = vunpack.c.l.b16 %v489
        %v536 = vunpack.c.h.b16 %v489
        %v537 = vunpack.c.l.b16 %v490
        %v538 = vunpack.c.h.b16 %v490
        %v539 = vpack.c.b16 %v509, %v507
        %v540 = vpack.c.b16 %v510, %v508
        %v541 = vpack.c.b16 %v513, %v511
        %v542 = vpack.c.b16 %v514, %v512
        %v543 = vpack.c.b16 %v517, %v515
        %v544 = vpack.c.b16 %v518, %v516
        %v545 = vpack.c.b16 %v521, %v519
        %v546 = vpack.c.b16 %v522, %v520
        %v547 = vpack.c.b16 %v525, %v523
        %v548 = vpack.c.b16 %v526, %v524
        %v549 = vpack.c.b16 %v529, %v527
        %v550 = vpack.c.b16 %v530, %v528
        %v551 = vpack.c.b16 %v533, %v531
        %v552 = vpack.c.b16 %v534, %v532
        %v553 = vpack.c.b16 %v537, %v535
        %v554 = vpack.c.b16 %v538, %v536
        %571 = vmatprep.subr.bf16.mxu0 %v540
        %572 = vmatpush1.bf16.msra.mxu0 %v539
        %573 = vmatprep.subr.bf16.mxu0 %v542
        %574 = vmatpush1.bf16.msra.mxu0 %v541
        %575 = vmatprep.subr.bf16.mxu0 %v544
        %576 = vmatpush1.bf16.msra.mxu0 %v543
        %577 = vmatprep.subr.bf16.mxu0 %v546
        %578 = vmatpush1.bf16.msra.mxu0 %v545
        %579 = vmatprep.subr.bf16.mxu0 %v548
        %580 = vmatpush1.bf16.msra.mxu0 %v547
        %581 = vmatprep.subr.bf16.mxu0 %v550
        %582 = vmatpush1.bf16.msra.mxu0 %v549
        %583 = vmatprep.subr.bf16.mxu0 %v552
        %584 = vmatpush1.bf16.msra.mxu0 %v551
        %585 = vmatprep.subr.bf16.mxu0 %v554
        %586 = vmatpush1.bf16.msra.mxu0 %v553
        %587 = vmatprep.subr.bf16.mxu0 0
        %588 = vmatpush1.bf16.msra.mxu0 0
        %589 = vmatprep.subr.bf16.mxu0 0
        %590 = vmatpush1.bf16.msra.mxu0 0
        %591 = vmatprep.subr.bf16.mxu0 0
        %592 = vmatpush1.bf16.msra.mxu0 0
        %593 = vmatprep.subr.bf16.mxu0 0
        %594 = vmatpush1.bf16.msra.mxu0 0
        %595 = vmatprep.subr.bf16.mxu0 0
        %596 = vmatpush1.bf16.msra.mxu0 0
        %597 = vmatprep.subr.bf16.mxu0 0
        %598 = vmatpush1.bf16.msra.mxu0 0
        %599 = vmatprep.subr.bf16.mxu0 0
        %600 = vmatpush1.bf16.msra.mxu0 0
        %601 = vmatprep.subr.bf16.mxu0 0
        %602 = vmatpush1.bf16.msra.mxu0 0
        %603 = vmatprep.mubr.bf16.mxu0 0
        %604 = vmatmul.mubr.bf16.gmra.mrb[0].mxu0 %v451
        %v605 = vpop.f32.mrb[0].mxu0
        %v606 = vadd.f32 0.0, %v605
        %v607 = vpop.f32.mrb[0].mxu0
        %v608 = vadd.f32 0.0, %v607
        %v609 = vpop.f32.mrb[0].mxu0
        %v610 = vadd.f32 0.0, %v609
        %v611 = vpop.f32.mrb[0].mxu0
        %v612 = vadd.f32 0.0, %v611
        %613 = vmatprep.mubr.bf16.mxu0 0
        %614 = vmatmul.mubr.bf16.gmra.mrb[0].mxu0 %v452
        %v615 = vpop.f32.mrb[0].mxu0
        %v616 = vadd.f32 0.0, %v615
        %v617 = vpop.f32.mrb[0].mxu0
        %v618 = vadd.f32 0.0, %v617
        %v619 = vpop.f32.mrb[0].mxu0
        %v620 = vadd.f32 0.0, %v619
        %v621 = vpop.f32.mrb[0].mxu0
        %v622 = vadd.f32 0.0, %v621
        %623 = vmatprep.mubr.bf16.mxu0 0
        %624 = vmatmul.mubr.bf16.gmra.mrb[0].mxu0 %v453
        %v625 = vpop.f32.mrb[0].mxu0
        %v626 = vadd.f32 0.0, %v625
        %v627 = vpop.f32.mrb[0].mxu0
        %v628 = vadd.f32 0.0, %v627
        %v629 = vpop.f32.mrb[0].mxu0
        %v630 = vadd.f32 0.0, %v629
        %v631 = vpop.f32.mrb[0].mxu0
        %v632 = vadd.f32 0.0, %v631
        %633 = vmatprep.mubr.bf16.mxu0 0
        %634 = vmatmul.mubr.bf16.gmra.mrb[0].mxu0 %v454
        %v635 = vpop.f32.mrb[0].mxu0
        %v636 = vadd.f32 0.0, %v635
        %v637 = vpop.f32.mrb[0].mxu0
        %v638 = vadd.f32 0.0, %v637
        %v639 = vpop.f32.mrb[0].mxu0
        %v640 = vadd.f32 0.0, %v639
        %v641 = vpop.f32.mrb[0].mxu0
        %v642 = vadd.f32 0.0, %v641
        %643 = vmatprep.mubr.bf16.mxu0 0
        %644 = vmatmul.mubr.bf16.gmra.mrb[0].mxu0 %v455
        %v645 = vpop.f32.mrb[0].mxu0
        %v646 = vadd.f32 0.0, %v645
        %v647 = vpop.f32.mrb[0].mxu0
        %v648 = vadd.f32 0.0, %v647
        %v649 = vpop.f32.mrb[0].mxu0
        %v650 = vadd.f32 0.0, %v649
        %v651 = vpop.f32.mrb[0].mxu0
        %v652 = vadd.f32 0.0, %v651
        %653 = vmatprep.mubr.bf16.mxu0 0
        %654 = vmatmul.mubr.bf16.gmra.mrb[0].mxu0 %v456
        %v655 = vpop.f32.mrb[0].mxu0
        %v656 = vadd.f32 0.0, %v655
        %v657 = vpop.f32.mrb[0].mxu0
        %v658 = vadd.f32 0.0, %v657
        %v659 = vpop.f32.mrb[0].mxu0
        %v660 = vadd.f32 0.0, %v659
        %v661 = vpop.f32.mrb[0].mxu0
        %v662 = vadd.f32 0.0, %v661
        %663 = vmatprep.mubr.bf16.mxu0 0
        %664 = vmatmul.mubr.bf16.gmra.mrb[0].mxu0 %v457
        %v665 = vpop.f32.mrb[0].mxu0
        %v666 = vadd.f32 0.0, %v665
        %v667 = vpop.f32.mrb[0].mxu0
        %v668 = vadd.f32 0.0, %v667
        %v669 = vpop.f32.mrb[0].mxu0
        %v670 = vadd.f32 0.0, %v669
        %v671 = vpop.f32.mrb[0].mxu0
        %v672 = vadd.f32 0.0, %v671
        %673 = vmatprep.mubr.bf16.mxu0 0
        %674 = vmatmul.mubr.bf16.gmra.mrb[0].mxu0 %v458
        %v675 = vpop.f32.mrb[0].mxu0
        %v676 = vadd.f32 0.0, %v675
        %v677 = vpop.f32.mrb[0].mxu0
        %v678 = vadd.f32 0.0, %v677
        %v679 = vpop.f32.mrb[0].mxu0
        %v680 = vadd.f32 0.0, %v679
        %v681 = vpop.f32.mrb[0].mxu0
        %v682 = vadd.f32 0.0, %v681
        %683 = vdwg.mxu0
        %v700 = vunpack.c.l.b16 %v459
        %v701 = vunpack.c.h.b16 %v459
        %v702 = vunpack.c.l.b16 %v460
        %v703 = vunpack.c.h.b16 %v460
        %v704 = vunpack.c.l.b16 %v461
        %v705 = vunpack.c.h.b16 %v461
        %v706 = vunpack.c.l.b16 %v462
        %v707 = vunpack.c.h.b16 %v462
        %v708 = vunpack.c.l.b16 %v463
        %v709 = vunpack.c.h.b16 %v463
        %v710 = vunpack.c.l.b16 %v464
        %v711 = vunpack.c.h.b16 %v464
        %v712 = vunpack.c.l.b16 %v465
        %v713 = vunpack.c.h.b16 %v465
        %v714 = vunpack.c.l.b16 %v466
        %v715 = vunpack.c.h.b16 %v466
        %v716 = vunpack.c.l.b16 %v467
        %v717 = vunpack.c.h.b16 %v467
        %v718 = vunpack.c.l.b16 %v468
        %v719 = vunpack.c.h.b16 %v468
        %v720 = vunpack.c.l.b16 %v469
        %v721 = vunpack.c.h.b16 %v469
        %v722 = vunpack.c.l.b16 %v470
        %v723 = vunpack.c.h.b16 %v470
        %v724 = vunpack.c.l.b16 %v471
        %v725 = vunpack.c.h.b16 %v471
        %v726 = vunpack.c.l.b16 %v472
        %v727 = vunpack.c.h.b16 %v472
        %v728 = vunpack.c.l.b16 %v473
        %v729 = vunpack.c.h.b16 %v473
        %v730 = vunpack.c.l.b16 %v474
        %v731 = vunpack.c.h.b16 %v474
        %v732 = vpack.c.b16 %v702, %v700
        %v733 = vpack.c.b16 %v703, %v701
        %v734 = vpack.c.b16 %v706, %v704
        %v735 = vpack.c.b16 %v707, %v705
        %v736 = vpack.c.b16 %v710, %v708
        %v737 = vpack.c.b16 %v711, %v709
        %v738 = vpack.c.b16 %v714, %v712
        %v739 = vpack.c.b16 %v715, %v713
        %v740 = vpack.c.b16 %v718, %v716
        %v741 = vpack.c.b16 %v719, %v717
        %v742 = vpack.c.b16 %v722, %v720
        %v743 = vpack.c.b16 %v723, %v721
        %v744 = vpack.c.b16 %v726, %v724
        %v745 = vpack.c.b16 %v727, %v725
        %v746 = vpack.c.b16 %v730, %v728
        %v747 = vpack.c.b16 %v731, %v729
        %764 = vmatprep.subr.bf16.mxu0 %v733
        %765 = vmatpush1.bf16.msra.mxu0 %v732
        %766 = vmatprep.subr.bf16.mxu0 %v735
        %767 = vmatpush1.bf16.msra.mxu0 %v734
        %768 = vmatprep.subr.bf16.mxu0 %v737
        %769 = vmatpush1.bf16.msra.mxu0 %v736
        %770 = vmatprep.subr.bf16.mxu0 %v739
        %771 = vmatpush1.bf16.msra.mxu0 %v738
        %772 = vmatprep.subr.bf16.mxu0 %v741
        %773 = vmatpush1.bf16.msra.mxu0 %v740
        %774 = vmatprep.subr.bf16.mxu0 %v743
        %775 = vmatpush1.bf16.msra.mxu0 %v742
        %776 = vmatprep.subr.bf16.mxu0 %v745
        %777 = vmatpush1.bf16.msra.mxu0 %v744
        %778 = vmatprep.subr.bf16.mxu0 %v747
        %779 = vmatpush1.bf16.msra.mxu0 %v746
        %780 = vmatprep.subr.bf16.mxu0 0
        %781 = vmatpush1.bf16.msra.mxu0 0
        %782 = vmatprep.subr.bf16.mxu0 0
        %783 = vmatpush1.bf16.msra.mxu0 0
        %784 = vmatprep.subr.bf16.mxu0 0
        %785 = vmatpush1.bf16.msra.mxu0 0
        %786 = vmatprep.subr.bf16.mxu0 0
        %787 = vmatpush1.bf16.msra.mxu0 0
        %788 = vmatprep.subr.bf16.mxu0 0
        %789 = vmatpush1.bf16.msra.mxu0 0
        %790 = vmatprep.subr.bf16.mxu0 0
        %791 = vmatpush1.bf16.msra.mxu0 0
        %792 = vmatprep.subr.bf16.mxu0 0
        %793 = vmatpush1.bf16.msra.mxu0 0
        %794 = vmatprep.subr.bf16.mxu0 0
        %795 = vmatpush1.bf16.msra.mxu0 0
        %796 = vmatprep.mubr.bf16.mxu0 0
        %797 = vmatmul.mubr.bf16.gmra.mrb[0].mxu0 %v443
        %v798 = vpop.f32.mrb[0].mxu0
        %v799 = vadd.f32 %v606, %v798
        %v800 = vpop.f32.mrb[0].mxu0
        %v801 = vadd.f32 %v608, %v800
        %v802 = vpop.f32.mrb[0].mxu0
        %v803 = vadd.f32 %v610, %v802
        %v804 = vpop.f32.mrb[0].mxu0
        %v805 = vadd.f32 %v612, %v804
        %806 = vmatprep.mubr.bf16.mxu0 0
        %807 = vmatmul.mubr.bf16.gmra.mrb[0].mxu0 %v444
        %v808 = vpop.f32.mrb[0].mxu0
        %v809 = vadd.f32 %v616, %v808
        %v810 = vpop.f32.mrb[0].mxu0
        %v811 = vadd.f32 %v618, %v810
        %v812 = vpop.f32.mrb[0].mxu0
        %v813 = vadd.f32 %v620, %v812
        %v814 = vpop.f32.mrb[0].mxu0
        %v815 = vadd.f32 %v622, %v814
        %816 = vmatprep.mubr.bf16.mxu0 0
        %817 = vmatmul.mubr.bf16.gmra.mrb[0].mxu0 %v445
        %v818 = vpop.f32.mrb[0].mxu0
        %v819 = vadd.f32 %v626, %v818
        %v820 = vpop.f32.mrb[0].mxu0
        %v821 = vadd.f32 %v628, %v820
        %v822 = vpop.f32.mrb[0].mxu0
        %v823 = vadd.f32 %v630, %v822
        %v824 = vpop.f32.mrb[0].mxu0
        %v825 = vadd.f32 %v632, %v824
        %826 = vmatprep.mubr.bf16.mxu0 0
        %827 = vmatmul.mubr.bf16.gmra.mrb[0].mxu0 %v446
        %v828 = vpop.f32.mrb[0].mxu0
        %v829 = vadd.f32 %v636, %v828
        %v830 = vpop.f32.mrb[0].mxu0
        %v831 = vadd.f32 %v638, %v830
        %v832 = vpop.f32.mrb[0].mxu0
        %v833 = vadd.f32 %v640, %v832
        %v834 = vpop.f32.mrb[0].mxu0
        %v835 = vadd.f32 %v642, %v834
        %836 = vmatprep.mubr.bf16.mxu0 0
        %837 = vmatmul.mubr.bf16.gmra.mrb[0].mxu0 %v447
        %v838 = vpop.f32.mrb[0].mxu0
        %v839 = vadd.f32 %v646, %v838
        %v840 = vpop.f32.mrb[0].mxu0
        %v841 = vadd.f32 %v648, %v840
        %v842 = vpop.f32.mrb[0].mxu0
        %v843 = vadd.f32 %v650, %v842
        %v844 = vpop.f32.mrb[0].mxu0
        %v845 = vadd.f32 %v652, %v844
        %846 = vmatprep.mubr.bf16.mxu0 0
        %847 = vmatmul.mubr.bf16.gmra.mrb[0].mxu0 %v448
        %v848 = vpop.f32.mrb[0].mxu0
        %v849 = vadd.f32 %v656, %v848
        %v850 = vpop.f32.mrb[0].mxu0
        %v851 = vadd.f32 %v658, %v850
        %v852 = vpop.f32.mrb[0].mxu0
        %v853 = vadd.f32 %v660, %v852
        %v854 = vpop.f32.mrb[0].mxu0
        %v855 = vadd.f32 %v662, %v854
        %856 = vmatprep.mubr.bf16.mxu0 0
        %857 = vmatmul.mubr.bf16.gmra.mrb[0].mxu0 %v449
        %v858 = vpop.f32.mrb[0].mxu0
        %v859 = vadd.f32 %v666, %v858
        %v860 = vpop.f32.mrb[0].mxu0
        %v861 = vadd.f32 %v668, %v860
        %v862 = vpop.f32.mrb[0].mxu0
        %v863 = vadd.f32 %v670, %v862
        %v864 = vpop.f32.mrb[0].mxu0
        %v865 = vadd.f32 %v672, %v864
        %866 = vmatprep.mubr.bf16.mxu0 0
        %867 = vmatmul.mubr.bf16.gmra.mrb[0].mxu0 %v450
        %v868 = vpop.f32.mrb[0].mxu0
        %v869 = vadd.f32 %v676, %v868
        %v870 = vpop.f32.mrb[0].mxu0
        %v871 = vadd.f32 %v678, %v870
        %v872 = vpop.f32.mrb[0].mxu0
        %v873 = vadd.f32 %v680, %v872
        %v874 = vpop.f32.mrb[0].mxu0
        %v875 = vadd.f32 %v682, %v874
        %876 = vdwg.mxu0
        %v877 = vld [vmem:[%s3] sm:$0x3]
        %v879 = vlaneseq
        %v880 = vshrl.u32 %v879, 7
        %v881 = vsub.s32 0, %v880
        %v882 = vrot.slane %v877, %v881
        %v883 = vlaneseq
        %v884 = vshrl.u32 %v883, 7
        %v885 = vsub.s32 1, %v884
        %v886 = vrot.slane %v877, %v885
        %v889 = vadd.f32 %v799, %v882
        %v890 = vadd.f32 %v801, %v886
        %v891 = vadd.f32 %v803, %v882
        %v892 = vadd.f32 %v805, %v886
        %v893 = vadd.f32 %v809, %v882
        %v894 = vadd.f32 %v811, %v886
        %v895 = vadd.f32 %v813, %v882
        %v896 = vadd.f32 %v815, %v886
        %v897 = vadd.f32 %v819, %v882
        %v898 = vadd.f32 %v821, %v886
        %v899 = vadd.f32 %v823, %v882
        %v900 = vadd.f32 %v825, %v886
        %v901 = vadd.f32 %v829, %v882
        %v902 = vadd.f32 %v831, %v886
        %v903 = vadd.f32 %v833, %v882
        %v904 = vadd.f32 %v835, %v886
        %v905 = vadd.f32 %v839, %v882
        %v906 = vadd.f32 %v841, %v886
        %v907 = vadd.f32 %v843, %v882
        %v908 = vadd.f32 %v845, %v886
        %v909 = vadd.f32 %v849, %v882
        %v910 = vadd.f32 %v851, %v886
        %v911 = vadd.f32 %v853, %v882
        %v912 = vadd.f32 %v855, %v886
        %v913 = vadd.f32 %v859, %v882
        %v914 = vadd.f32 %v861, %v886
        %v915 = vadd.f32 %v863, %v882
        %v916 = vadd.f32 %v865, %v886
        %v917 = vadd.f32 %v869, %v882
        %v918 = vadd.f32 %v871, %v886
        %v919 = vadd.f32 %v873, %v882
        %v920 = vadd.f32 %v875, %v886
        %v921 = vmax.f32 %v889, 0.0
        %v922 = vmax.f32 %v890, 0.0
        %v923 = vmax.f32 %v891, 0.0
        %v924 = vmax.f32 %v892, 0.0
        %v925 = vmax.f32 %v893, 0.0
        %v926 = vmax.f32 %v894, 0.0
        %v927 = vmax.f32 %v895, 0.0
        %v928 = vmax.f32 %v896, 0.0
        %v929 = vmax.f32 %v897, 0.0
        %v930 = vmax.f32 %v898, 0.0
        %v931 = vmax.f32 %v899, 0.0
        %v932 = vmax.f32 %v900, 0.0
        %v933 = vmax.f32 %v901, 0.0
        %v934 = vmax.f32 %v902, 0.0
        %v935 = vmax.f32 %v903, 0.0
        %v936 = vmax.f32 %v904, 0.0
        %v937 = vmax.f32 %v905, 0.0
        %v938 = vmax.f32 %v906, 0.0
        %v939 = vmax.f32 %v907, 0.0
        %v940 = vmax.f32 %v908, 0.0
        %v941 = vmax.f32 %v909, 0.0
        %v942 = vmax.f32 %v910, 0.0
        %v943 = vmax.f32 %v911, 0.0
        %v944 = vmax.f32 %v912, 0.0
        %v945 = vmax.f32 %v913, 0.0
        %v946 = vmax.f32 %v914, 0.0
        %v947 = vmax.f32 %v915, 0.0
        %v948 = vmax.f32 %v916, 0.0
        %v949 = vmax.f32 %v917, 0.0
        %v950 = vmax.f32 %v918, 0.0
        %v951 = vmax.f32 %v919, 0.0
        %v952 = vmax.f32 %v920, 0.0
        %v953 = vpack.c.bf16 %v923, %v921
        %v954 = vpack.c.bf16 %v924, %v922
        %v955 = vpack.c.bf16 %v927, %v925
        %v956 = vpack.c.bf16 %v928, %v926
        %v957 = vpack.c.bf16 %v931, %v929
        %v958 = vpack.c.bf16 %v932, %v930
        %v959 = vpack.c.bf16 %v935, %v933
        %v960 = vpack.c.bf16 %v936, %v934
        %v961 = vpack.c.bf16 %v939, %v937
        %v962 = vpack.c.bf16 %v940, %v938
        %v963 = vpack.c.bf16 %v943, %v941
        %v964 = vpack.c.bf16 %v944, %v942
        %v965 = vpack.c.bf16 %v947, %v945
        %v966 = vpack.c.bf16 %v948, %v946
        %v967 = vpack.c.bf16 %v951, %v949
        %v968 = vpack.c.bf16 %v952, %v950
        %v969 = vld [vmem:[#allocation8] sm:$0xf]
        %v970 = vld [vmem:[#allocation8 + $0x8] sm:$0xf]
        %v971 = vld [vmem:[#allocation8 + $0x10] sm:$0xf]
        %v972 = vld [vmem:[#allocation8 + $0x18] sm:$0xf]
        %v973 = vld [vmem:[#allocation8 + $0x20] sm:$0xf]
        %v974 = vld [vmem:[#allocation8 + $0x28] sm:$0xf]
        %v975 = vld [vmem:[#allocation8 + $0x30] sm:$0xf]
        %v976 = vld [vmem:[#allocation8 + $0x38] sm:$0xf]
        %v977 = vld [vmem:[#allocation8 + $0x40] sm:$0xf]
        %v978 = vld [vmem:[#allocation8 + $0x48] sm:$0xf]
        %v979 = vld [vmem:[#allocation8 + $0x50] sm:$0xf]
        %v980 = vld [vmem:[#allocation8 + $0x58] sm:$0xf]
        %v981 = vld [vmem:[#allocation8 + $0x60] sm:$0xf]
        %v982 = vld [vmem:[#allocation8 + $0x68] sm:$0xf]
        %v983 = vld [vmem:[#allocation8 + $0x70] sm:$0xf]
        %v984 = vld [vmem:[#allocation8 + $0x78] sm:$0xf]
        %v985 = vld [vmem:[#allocation8 + $0x80] sm:$0xf]
        %v986 = vld [vmem:[#allocation8 + $0x88] sm:$0xf]
        %v987 = vld [vmem:[#allocation8 + $0x90] sm:$0xf]
        %v988 = vld [vmem:[#allocation8 + $0x98] sm:$0xf]
        %v989 = vld [vmem:[#allocation8 + $0xa0] sm:$0xf]
        %v990 = vld [vmem:[#allocation8 + $0xa8] sm:$0xf]
        %v991 = vld [vmem:[#allocation8 + $0xb0] sm:$0xf]
        %v992 = vld [vmem:[#allocation8 + $0xb8] sm:$0xf]
        %v993 = vld [vmem:[#allocation8 + $0xc0] sm:$0xf]
        %v994 = vld [vmem:[#allocation8 + $0xc8] sm:$0xf]
        %v995 = vld [vmem:[#allocation8 + $0xd0] sm:$0xf]
        %v996 = vld [vmem:[#allocation8 + $0xd8] sm:$0xf]
        %v997 = vld [vmem:[#allocation8 + $0xe0] sm:$0xf]
        %v998 = vld [vmem:[#allocation8 + $0xe8] sm:$0xf]
        %v999 = vld [vmem:[#allocation8 + $0xf0] sm:$0xf]
        %v1000 = vld [vmem:[#allocation8 + $0xf8] sm:$0xf]
        %v1001 = vld [vmem:[%s6] sm:$0x1]
        %v1003 = vlaneseq
        %v1004 = vshrl.u32 %v1003, 7
        %v1005 = vsub.s32 0, %v1004
        %v1006 = vrot.slane %v1001, %v1005
        %v1040 = vunpack.c.l.b16 %v969
        %v1041 = vunpack.c.l.b16 %v970
        %v1042 = vunpack.c.l.b16 %v971
        %v1043 = vunpack.c.l.b16 %v972
        %v1044 = vunpack.c.l.b16 %v973
        %v1045 = vunpack.c.l.b16 %v974
        %v1046 = vunpack.c.l.b16 %v975
        %v1047 = vunpack.c.l.b16 %v976
        %v1048 = vunpack.c.l.b16 %v977
        %v1049 = vunpack.c.l.b16 %v978
        %v1050 = vunpack.c.l.b16 %v979
        %v1051 = vunpack.c.l.b16 %v980
        %v1052 = vunpack.c.l.b16 %v981
        %v1053 = vunpack.c.l.b16 %v982
        %v1054 = vunpack.c.l.b16 %v983
        %v1055 = vunpack.c.l.b16 %v984
        %v1056 = vunpack.c.l.b16 %v985
        %v1057 = vunpack.c.l.b16 %v986
        %v1058 = vunpack.c.l.b16 %v987
        %v1059 = vunpack.c.l.b16 %v988
        %v1060 = vunpack.c.l.b16 %v989
        %v1061 = vunpack.c.l.b16 %v990
        %v1062 = vunpack.c.l.b16 %v991
        %v1063 = vunpack.c.l.b16 %v992
        %v1064 = vunpack.c.l.b16 %v993
        %v1065 = vunpack.c.l.b16 %v994
        %v1066 = vunpack.c.l.b16 %v995
        %v1067 = vunpack.c.l.b16 %v996
        %v1068 = vunpack.c.l.b16 %v997
        %v1069 = vunpack.c.l.b16 %v998
        %v1070 = vunpack.c.l.b16 %v999
        %v1071 = vunpack.c.l.b16 %v1000
        %v1072 = vpack.c.b16 %v1041, %v1040
        %v1073 = vpack.c.b16 %v1043, %v1042
        %v1074 = vpack.c.b16 %v1045, %v1044
        %v1075 = vpack.c.b16 %v1047, %v1046
        %v1076 = vpack.c.b16 %v1049, %v1048
        %v1077 = vpack.c.b16 %v1051, %v1050
        %v1078 = vpack.c.b16 %v1053, %v1052
        %v1079 = vpack.c.b16 %v1055, %v1054
        %v1080 = vpack.c.b16 %v1057, %v1056
        %v1081 = vpack.c.b16 %v1059, %v1058
        %v1082 = vpack.c.b16 %v1061, %v1060
        %v1083 = vpack.c.b16 %v1063, %v1062
        %v1084 = vpack.c.b16 %v1065, %v1064
        %v1085 = vpack.c.b16 %v1067, %v1066
        %v1086 = vpack.c.b16 %v1069, %v1068
        %v1087 = vpack.c.b16 %v1071, %v1070
        %1104 = vmatprep.subr.bf16.mxu0 0
        %1105 = vmatpush1.bf16.msra.mxu0 %v1072
        %1106 = vmatprep.subr.bf16.mxu0 0
        %1107 = vmatpush1.bf16.msra.mxu0 %v1073
        %1108 = vmatprep.subr.bf16.mxu0 0
        %1109 = vmatpush1.bf16.msra.mxu0 %v1074
        %1110 = vmatprep.subr.bf16.mxu0 0
        %1111 = vmatpush1.bf16.msra.mxu0 %v1075
        %1112 = vmatprep.subr.bf16.mxu0 0
        %1113 = vmatpush1.bf16.msra.mxu0 %v1076
        %1114 = vmatprep.subr.bf16.mxu0 0
        %1115 = vmatpush1.bf16.msra.mxu0 %v1077
        %1116 = vmatprep.subr.bf16.mxu0 0
        %1117 = vmatpush1.bf16.msra.mxu0 %v1078
        %1118 = vmatprep.subr.bf16.mxu0 0
        %1119 = vmatpush1.bf16.msra.mxu0 %v1079
        %1120 = vmatprep.subr.bf16.mxu0 0
        %1121 = vmatpush1.bf16.msra.mxu0 %v1080
        %1122 = vmatprep.subr.bf16.mxu0 0
        %1123 = vmatpush1.bf16.msra.mxu0 %v1081
        %1124 = vmatprep.subr.bf16.mxu0 0
        %1125 = vmatpush1.bf16.msra.mxu0 %v1082
        %1126 = vmatprep.subr.bf16.mxu0 0
        %1127 = vmatpush1.bf16.msra.mxu0 %v1083
        %1128 = vmatprep.subr.bf16.mxu0 0
        %1129 = vmatpush1.bf16.msra.mxu0 %v1084
        %1130 = vmatprep.subr.bf16.mxu0 0
        %1131 = vmatpush1.bf16.msra.mxu0 %v1085
        %1132 = vmatprep.subr.bf16.mxu0 0
        %1133 = vmatpush1.bf16.msra.mxu0 %v1086
        %1134 = vmatprep.subr.bf16.mxu0 0
        %1135 = vmatpush1.bf16.msra.mxu0 %v1087
        %1136 = vmatprep.mubr.bf16.mxu0 %v954
        %1137 = vmatmul.mubr.bf16.gmra.mrb[0].mxu0 %v953
        %v1138 = vpop.f32.mrb[0].mxu0
        %v1139 = vadd.f32 %v1006, %v1138
        %v1140 = vpop.f32.mrb[0].mxu0
        %v1141 = vpop.f32.mrb[0].mxu0
        %v1142 = vadd.f32 %v1006, %v1141
        %v1143 = vpop.f32.mrb[0].mxu0
        %1144 = vmatprep.mubr.bf16.mxu0 %v956
        %1145 = vmatmul.mubr.bf16.gmra.mrb[0].mxu0 %v955
        %v1146 = vpop.f32.mrb[0].mxu0
        %v1147 = vadd.f32 %v1006, %v1146
        %v1148 = vpop.f32.mrb[0].mxu0
        %v1149 = vpop.f32.mrb[0].mxu0
        %v1150 = vadd.f32 %v1006, %v1149
        %v1151 = vpop.f32.mrb[0].mxu0
        %1152 = vmatprep.mubr.bf16.mxu0 %v958
        %1153 = vmatmul.mubr.bf16.gmra.mrb[0].mxu0 %v957
        %v1154 = vpop.f32.mrb[0].mxu0
        %v1155 = vadd.f32 %v1006, %v1154
        %v1156 = vpop.f32.mrb[0].mxu0
        %v1157 = vpop.f32.mrb[0].mxu0
        %v1158 = vadd.f32 %v1006, %v1157
        %v1159 = vpop.f32.mrb[0].mxu0
        %1160 = vmatprep.mubr.bf16.mxu0 %v960
        %1161 = vmatmul.mubr.bf16.gmra.mrb[0].mxu0 %v959
        %v1162 = vpop.f32.mrb[0].mxu0
        %v1163 = vadd.f32 %v1006, %v1162
        %v1164 = vpop.f32.mrb[0].mxu0
        %v1165 = vpop.f32.mrb[0].mxu0
        %v1166 = vadd.f32 %v1006, %v1165
        %v1167 = vpop.f32.mrb[0].mxu0
        %1168 = vmatprep.mubr.bf16.mxu0 %v962
        %1169 = vmatmul.mubr.bf16.gmra.mrb[0].mxu0 %v961
        %v1170 = vpop.f32.mrb[0].mxu0
        %v1171 = vadd.f32 %v1006, %v1170
        %v1172 = vpop.f32.mrb[0].mxu0
        %v1173 = vpop.f32.mrb[0].mxu0
        %v1174 = vadd.f32 %v1006, %v1173
        %v1175 = vpop.f32.mrb[0].mxu0
        %1176 = vmatprep.mubr.bf16.mxu0 %v964
        %1177 = vmatmul.mubr.bf16.gmra.mrb[0].mxu0 %v963
        %v1178 = vpop.f32.mrb[0].mxu0
        %v1179 = vadd.f32 %v1006, %v1178
        %v1180 = vpop.f32.mrb[0].mxu0
        %v1181 = vpop.f32.mrb[0].mxu0
        %v1182 = vadd.f32 %v1006, %v1181
        %v1183 = vpop.f32.mrb[0].mxu0
        %1184 = vmatprep.mubr.bf16.mxu0 %v966
        %1185 = vmatmul.mubr.bf16.gmra.mrb[0].mxu0 %v965
        %v1186 = vpop.f32.mrb[0].mxu0
        %v1187 = vadd.f32 %v1006, %v1186
        %v1188 = vpop.f32.mrb[0].mxu0
        %v1189 = vpop.f32.mrb[0].mxu0
        %v1190 = vadd.f32 %v1006, %v1189
        %v1191 = vpop.f32.mrb[0].mxu0
        %1192 = vmatprep.mubr.bf16.mxu0 %v968
        %1193 = vmatmul.mubr.bf16.gmra.mrb[0].mxu0 %v967
        %v1194 = vpop.f32.mrb[0].mxu0
        %v1195 = vadd.f32 %v1006, %v1194
        %v1196 = vpop.f32.mrb[0].mxu0
        %v1197 = vpop.f32.mrb[0].mxu0
        %v1198 = vadd.f32 %v1006, %v1197
        %v1199 = vpop.f32.mrb[0].mxu0
        %1200 = vdwg.mxu0
        %v1201 = vld [vmem:[#allocation10] sm:$0xf]
        %v1202 = vld [vmem:[#allocation10 + $0x8] sm:$0xf]
        %v1203 = vld [vmem:[#allocation10 + $0x10] sm:$0xf]
        %v1204 = vld [vmem:[#allocation10 + $0x18] sm:$0xf]
        %v1205 = vld [vmem:[#allocation10 + $0x20] sm:$0xf]
        %v1206 = vld [vmem:[#allocation10 + $0x28] sm:$0xf]
        %v1207 = vld [vmem:[#allocation10 + $0x30] sm:$0xf]
        %v1208 = vld [vmem:[#allocation10 + $0x38] sm:$0xf]
        %v1209 = vld [vmem:[#allocation10 + $0x40] sm:$0xf]
        %v1210 = vld [vmem:[#allocation10 + $0x48] sm:$0xf]
        %v1211 = vld [vmem:[#allocation10 + $0x50] sm:$0xf]
        %v1212 = vld [vmem:[#allocation10 + $0x58] sm:$0xf]
        %v1213 = vld [vmem:[#allocation10 + $0x60] sm:$0xf]
        %v1214 = vld [vmem:[#allocation10 + $0x68] sm:$0xf]
        %v1215 = vld [vmem:[#allocation10 + $0x70] sm:$0xf]
        %v1216 = vld [vmem:[#allocation10 + $0x78] sm:$0xf]
        %v1217 = vld [vmem:[#allocation10 + $0x80] sm:$0xf]
        %v1218 = vld [vmem:[#allocation10 + $0x88] sm:$0xf]
        %v1219 = vld [vmem:[#allocation10 + $0x90] sm:$0xf]
        %v1220 = vld [vmem:[#allocation10 + $0x98] sm:$0xf]
        %v1221 = vld [vmem:[#allocation10 + $0xa0] sm:$0xf]
        %v1222 = vld [vmem:[#allocation10 + $0xa8] sm:$0xf]
        %v1223 = vld [vmem:[#allocation10 + $0xb0] sm:$0xf]
        %v1224 = vld [vmem:[#allocation10 + $0xb8] sm:$0xf]
        %v1225 = vld [vmem:[#allocation10 + $0xc0] sm:$0xf]
        %v1226 = vld [vmem:[#allocation10 + $0xc8] sm:$0xf]
        %v1227 = vld [vmem:[#allocation10 + $0xd0] sm:$0xf]
        %v1228 = vld [vmem:[#allocation10 + $0xd8] sm:$0xf]
        %v1229 = vld [vmem:[#allocation10 + $0xe0] sm:$0xf]
        %v1230 = vld [vmem:[#allocation10 + $0xe8] sm:$0xf]
        %v1231 = vld [vmem:[#allocation10 + $0xf0] sm:$0xf]
        %v1232 = vld [vmem:[#allocation10 + $0xf8] sm:$0xf]
        %v1233 = vld [vmem:[%s7] sm:$0x1]
        %v1235 = vlaneseq
        %v1236 = vshrl.u32 %v1235, 7
        %v1237 = vsub.s32 0, %v1236
        %v1238 = vrot.slane %v1233, %v1237
        %v1272 = vunpack.c.l.b16 %v1201
        %v1273 = vunpack.c.l.b16 %v1202
        %v1274 = vunpack.c.l.b16 %v1203
        %v1275 = vunpack.c.l.b16 %v1204
        %v1276 = vunpack.c.l.b16 %v1205
        %v1277 = vunpack.c.l.b16 %v1206
        %v1278 = vunpack.c.l.b16 %v1207
        %v1279 = vunpack.c.l.b16 %v1208
        %v1280 = vunpack.c.l.b16 %v1209
        %v1281 = vunpack.c.l.b16 %v1210
        %v1282 = vunpack.c.l.b16 %v1211
        %v1283 = vunpack.c.l.b16 %v1212
        %v1284 = vunpack.c.l.b16 %v1213
        %v1285 = vunpack.c.l.b16 %v1214
        %v1286 = vunpack.c.l.b16 %v1215
        %v1287 = vunpack.c.l.b16 %v1216
        %v1288 = vunpack.c.l.b16 %v1217
        %v1289 = vunpack.c.l.b16 %v1218
        %v1290 = vunpack.c.l.b16 %v1219
        %v1291 = vunpack.c.l.b16 %v1220
        %v1292 = vunpack.c.l.b16 %v1221
        %v1293 = vunpack.c.l.b16 %v1222
        %v1294 = vunpack.c.l.b16 %v1223
        %v1295 = vunpack.c.l.b16 %v1224
        %v1296 = vunpack.c.l.b16 %v1225
        %v1297 = vunpack.c.l.b16 %v1226
        %v1298 = vunpack.c.l.b16 %v1227
        %v1299 = vunpack.c.l.b16 %v1228
        %v1300 = vunpack.c.l.b16 %v1229
        %v1301 = vunpack.c.l.b16 %v1230
        %v1302 = vunpack.c.l.b16 %v1231
        %v1303 = vunpack.c.l.b16 %v1232
        %v1304 = vpack.c.b16 %v1273, %v1272
        %v1305 = vpack.c.b16 %v1275, %v1274
        %v1306 = vpack.c.b16 %v1277, %v1276
        %v1307 = vpack.c.b16 %v1279, %v1278
        %v1308 = vpack.c.b16 %v1281, %v1280
        %v1309 = vpack.c.b16 %v1283, %v1282
        %v1310 = vpack.c.b16 %v1285, %v1284
        %v1311 = vpack.c.b16 %v1287, %v1286
        %v1312 = vpack.c.b16 %v1289, %v1288
        %v1313 = vpack.c.b16 %v1291, %v1290
        %v1314 = vpack.c.b16 %v1293, %v1292
        %v1315 = vpack.c.b16 %v1295, %v1294
        %v1316 = vpack.c.b16 %v1297, %v1296
        %v1317 = vpack.c.b16 %v1299, %v1298
        %v1318 = vpack.c.b16 %v1301, %v1300
        %v1319 = vpack.c.b16 %v1303, %v1302
        %1336 = vmatprep.subr.bf16.mxu0 0
        %1337 = vmatpush1.bf16.msra.mxu0 %v1304
        %1338 = vmatprep.subr.bf16.mxu0 0
        %1339 = vmatpush1.bf16.msra.mxu0 %v1305
        %1340 = vmatprep.subr.bf16.mxu0 0
        %1341 = vmatpush1.bf16.msra.mxu0 %v1306
        %1342 = vmatprep.subr.bf16.mxu0 0
        %1343 = vmatpush1.bf16.msra.mxu0 %v1307
        %1344 = vmatprep.subr.bf16.mxu0 0
        %1345 = vmatpush1.bf16.msra.mxu0 %v1308
        %1346 = vmatprep.subr.bf16.mxu0 0
        %1347 = vmatpush1.bf16.msra.mxu0 %v1309
        %1348 = vmatprep.subr.bf16.mxu0 0
        %1349 = vmatpush1.bf16.msra.mxu0 %v1310
        %1350 = vmatprep.subr.bf16.mxu0 0
        %1351 = vmatpush1.bf16.msra.mxu0 %v1311
        %1352 = vmatprep.subr.bf16.mxu0 0
        %1353 = vmatpush1.bf16.msra.mxu0 %v1312
        %1354 = vmatprep.subr.bf16.mxu0 0
        %1355 = vmatpush1.bf16.msra.mxu0 %v1313
        %1356 = vmatprep.subr.bf16.mxu0 0
        %1357 = vmatpush1.bf16.msra.mxu0 %v1314
        %1358 = vmatprep.subr.bf16.mxu0 0
        %1359 = vmatpush1.bf16.msra.mxu0 %v1315
        %1360 = vmatprep.subr.bf16.mxu0 0
        %1361 = vmatpush1.bf16.msra.mxu0 %v1316
        %1362 = vmatprep.subr.bf16.mxu0 0
        %1363 = vmatpush1.bf16.msra.mxu0 %v1317
        %1364 = vmatprep.subr.bf16.mxu0 0
        %1365 = vmatpush1.bf16.msra.mxu0 %v1318
        %1366 = vmatprep.subr.bf16.mxu0 0
        %1367 = vmatpush1.bf16.msra.mxu0 %v1319
        %1368 = vmatprep.mubr.bf16.mxu0 %v954
        %1369 = vmatmul.mubr.bf16.gmra.mrb[0].mxu0 %v953
        %v1370 = vpop.f32.mrb[0].mxu0
        %v1371 = vadd.f32 %v1238, %v1370
        %v1372 = vpop.f32.mrb[0].mxu0
        %v1373 = vpop.f32.mrb[0].mxu0
        %v1374 = vadd.f32 %v1238, %v1373
        %v1375 = vpop.f32.mrb[0].mxu0
        %1376 = vmatprep.mubr.bf16.mxu0 %v956
        %1377 = vmatmul.mubr.bf16.gmra.mrb[0].mxu0 %v955
        %v1378 = vpop.f32.mrb[0].mxu0
        %v1379 = vadd.f32 %v1238, %v1378
        %v1380 = vpop.f32.mrb[0].mxu0
        %v1381 = vpop.f32.mrb[0].mxu0
        %v1382 = vadd.f32 %v1238, %v1381
        %v1383 = vpop.f32.mrb[0].mxu0
        %1384 = vmatprep.mubr.bf16.mxu0 %v958
        %1385 = vmatmul.mubr.bf16.gmra.mrb[0].mxu0 %v957
        %v1386 = vpop.f32.mrb[0].mxu0
        %v1387 = vadd.f32 %v1238, %v1386
        %v1388 = vpop.f32.mrb[0].mxu0
        %v1389 = vpop.f32.mrb[0].mxu0
        %v1390 = vadd.f32 %v1238, %v1389
        %v1391 = vpop.f32.mrb[0].mxu0
        %1392 = vmatprep.mubr.bf16.mxu0 %v960
        %1393 = vmatmul.mubr.bf16.gmra.mrb[0].mxu0 %v959
        %v1394 = vpop.f32.mrb[0].mxu0
        %v1395 = vadd.f32 %v1238, %v1394
        %v1396 = vpop.f32.mrb[0].mxu0
        %v1397 = vpop.f32.mrb[0].mxu0
        %v1398 = vadd.f32 %v1238, %v1397
        %v1399 = vpop.f32.mrb[0].mxu0
        %1400 = vmatprep.mubr.bf16.mxu0 %v962
        %1401 = vmatmul.mubr.bf16.gmra.mrb[0].mxu0 %v961
        %v1402 = vpop.f32.mrb[0].mxu0
        %v1403 = vadd.f32 %v1238, %v1402
        %v1404 = vpop.f32.mrb[0].mxu0
        %v1405 = vpop.f32.mrb[0].mxu0
        %v1406 = vadd.f32 %v1238, %v1405
        %v1407 = vpop.f32.mrb[0].mxu0
        %1408 = vmatprep.mubr.bf16.mxu0 %v964
        %1409 = vmatmul.mubr.bf16.gmra.mrb[0].mxu0 %v963
        %v1410 = vpop.f32.mrb[0].mxu0
        %v1411 = vadd.f32 %v1238, %v1410
        %v1412 = vpop.f32.mrb[0].mxu0
        %v1413 = vpop.f32.mrb[0].mxu0
        %v1414 = vadd.f32 %v1238, %v1413
        %v1415 = vpop.f32.mrb[0].mxu0
        %1416 = vmatprep.mubr.bf16.mxu0 %v966
        %1417 = vmatmul.mubr.bf16.gmra.mrb[0].mxu0 %v965
        %v1418 = vpop.f32.mrb[0].mxu0
        %v1419 = vadd.f32 %v1238, %v1418
        %v1420 = vpop.f32.mrb[0].mxu0
        %v1421 = vpop.f32.mrb[0].mxu0
        %v1422 = vadd.f32 %v1238, %v1421
        %v1423 = vpop.f32.mrb[0].mxu0
        %1424 = vmatprep.mubr.bf16.mxu0 %v968
        %1425 = vmatmul.mubr.bf16.gmra.mrb[0].mxu0 %v967
        %v1426 = vpop.f32.mrb[0].mxu0
        %v1427 = vadd.f32 %v1238, %v1426
        %v1428 = vpop.f32.mrb[0].mxu0
        %v1429 = vpop.f32.mrb[0].mxu0
        %v1430 = vadd.f32 %v1238, %v1429
        %v1431 = vpop.f32.mrb[0].mxu0
        %1432 = vdwg.mxu0
        %v1433 = vxor.u32 %v1139, 2147483648
        %v1434 = vxor.u32 %v1142, 2147483648
        %v1435 = vxor.u32 %v1147, 2147483648
        %v1436 = vxor.u32 %v1150, 2147483648
        %v1437 = vxor.u32 %v1155, 2147483648
        %v1438 = vxor.u32 %v1158, 2147483648
        %v1439 = vxor.u32 %v1163, 2147483648
        %v1440 = vxor.u32 %v1166, 2147483648
        %v1441 = vxor.u32 %v1171, 2147483648
        %v1442 = vxor.u32 %v1174, 2147483648
        %v1443 = vxor.u32 %v1179, 2147483648
        %v1444 = vxor.u32 %v1182, 2147483648
        %v1445 = vxor.u32 %v1187, 2147483648
        %v1446 = vxor.u32 %v1190, 2147483648
        %v1447 = vxor.u32 %v1195, 2147483648
        %v1448 = vxor.u32 %v1198, 2147483648
        %v1449 = vmul.f32 %v1433, 1.442695
        %v1450 = vpow.pop %v1449
        %v1451 = vmul.f32 %v1434, 1.442695
        %v1452 = vpow.pop %v1451
        %v1453 = vmul.f32 %v1435, 1.442695
        %v1454 = vpow.pop %v1453
        %v1455 = vmul.f32 %v1436, 1.442695
        %v1456 = vpow.pop %v1455
        %v1457 = vmul.f32 %v1437, 1.442695
        %v1458 = vpow.pop %v1457
        %v1459 = vmul.f32 %v1438, 1.442695
        %v1460 = vpow.pop %v1459
        %v1461 = vmul.f32 %v1439, 1.442695
        %v1462 = vpow.pop %v1461
        %v1463 = vmul.f32 %v1440, 1.442695
        %v1464 = vpow.pop %v1463
        %v1465 = vmul.f32 %v1441, 1.442695
        %v1466 = vpow.pop %v1465
        %v1467 = vmul.f32 %v1442, 1.442695
        %v1468 = vpow.pop %v1467
        %v1469 = vmul.f32 %v1443, 1.442695
        %v1470 = vpow.pop %v1469
        %v1471 = vmul.f32 %v1444, 1.442695
        %v1472 = vpow.pop %v1471
        %v1473 = vmul.f32 %v1445, 1.442695
        %v1474 = vpow.pop %v1473
        %v1475 = vmul.f32 %v1446, 1.442695
        %v1476 = vpow.pop %v1475
        %v1477 = vmul.f32 %v1447, 1.442695
        %v1478 = vpow.pop %v1477
        %v1479 = vmul.f32 %v1448, 1.442695
        %v1480 = vpow.pop %v1479
        %v1481 = vadd.f32 %v1450, 1.0
        %v1482 = vadd.f32 %v1452, 1.0
        %v1483 = vadd.f32 %v1454, 1.0
        %v1484 = vadd.f32 %v1456, 1.0
        %v1485 = vadd.f32 %v1458, 1.0
        %v1486 = vadd.f32 %v1460, 1.0
        %v1487 = vadd.f32 %v1462, 1.0
        %v1488 = vadd.f32 %v1464, 1.0
        %v1489 = vadd.f32 %v1466, 1.0
        %v1490 = vadd.f32 %v1468, 1.0
        %v1491 = vadd.f32 %v1470, 1.0
        %v1492 = vadd.f32 %v1472, 1.0
        %v1493 = vadd.f32 %v1474, 1.0
        %v1494 = vadd.f32 %v1476, 1.0
        %v1495 = vadd.f32 %v1478, 1.0
        %v1496 = vadd.f32 %v1480, 1.0
        %v1497 = vrcp.pop %v1481
        %v1498 = vmul.f32 1.0, %v1497
        %v1499 = vrcp.pop %v1482
        %v1500 = vmul.f32 1.0, %v1499
        %v1501 = vrcp.pop %v1483
        %v1502 = vmul.f32 1.0, %v1501
        %v1503 = vrcp.pop %v1484
        %v1504 = vmul.f32 1.0, %v1503
        %v1505 = vrcp.pop %v1485
        %v1506 = vmul.f32 1.0, %v1505
        %v1507 = vrcp.pop %v1486
        %v1508 = vmul.f32 1.0, %v1507
        %v1509 = vrcp.pop %v1487
        %v1510 = vmul.f32 1.0, %v1509
        %v1511 = vrcp.pop %v1488
        %v1512 = vmul.f32 1.0, %v1511
        %v1513 = vrcp.pop %v1489
        %v1514 = vmul.f32 1.0, %v1513
        %v1515 = vrcp.pop %v1490
        %v1516 = vmul.f32 1.0, %v1515
        %v1517 = vrcp.pop %v1491
        %v1518 = vmul.f32 1.0, %v1517
        %v1519 = vrcp.pop %v1492
        %v1520 = vmul.f32 1.0, %v1519
        %v1521 = vrcp.pop %v1493
        %v1522 = vmul.f32 1.0, %v1521
        %v1523 = vrcp.pop %v1494
        %v1524 = vmul.f32 1.0, %v1523
        %v1525 = vrcp.pop %v1495
        %v1526 = vmul.f32 1.0, %v1525
        %v1527 = vrcp.pop %v1496
        %v1528 = vmul.f32 1.0, %v1527
        %v1529 = vtanh.pop %v1371
        %v1530 = vtanh.pop %v1374
        %v1531 = vtanh.pop %v1379
        %v1532 = vtanh.pop %v1382
        %v1533 = vtanh.pop %v1387
        %v1534 = vtanh.pop %v1390
        %v1535 = vtanh.pop %v1395
        %v1536 = vtanh.pop %v1398
        %v1537 = vtanh.pop %v1403
        %v1538 = vtanh.pop %v1406
        %v1539 = vtanh.pop %v1411
        %v1540 = vtanh.pop %v1414
        %v1541 = vtanh.pop %v1419
        %v1542 = vtanh.pop %v1422
        %v1543 = vtanh.pop %v1427
        %v1544 = vtanh.pop %v1430
        %v1545 = vsub.f32 %v1529, %v411
        %v1546 = vsub.f32 %v1530, %v412
        %v1547 = vsub.f32 %v1531, %v413
        %v1548 = vsub.f32 %v1532, %v414
        %v1549 = vsub.f32 %v1533, %v415
        %v1550 = vsub.f32 %v1534, %v416
        %v1551 = vsub.f32 %v1535, %v417
        %v1552 = vsub.f32 %v1536, %v418
        %v1553 = vsub.f32 %v1537, %v419
        %v1554 = vsub.f32 %v1538, %v420
        %v1555 = vsub.f32 %v1539, %v421
        %v1556 = vsub.f32 %v1540, %v422
        %v1557 = vsub.f32 %v1541, %v423
        %v1558 = vsub.f32 %v1542, %v424
        %v1559 = vsub.f32 %v1543, %v425
        %v1560 = vsub.f32 %v1544, %v426
        %v1561 = vmul.f32 %v1498, %v1545
        %v1562 = vmul.f32 %v1500, %v1546
        %v1563 = vmul.f32 %v1502, %v1547
        %v1564 = vmul.f32 %v1504, %v1548
        %v1565 = vmul.f32 %v1506, %v1549
        %v1566 = vmul.f32 %v1508, %v1550
        %v1567 = vmul.f32 %v1510, %v1551
        %v1568 = vmul.f32 %v1512, %v1552
        %v1569 = vmul.f32 %v1514, %v1553
        %v1570 = vmul.f32 %v1516, %v1554
        %v1571 = vmul.f32 %v1518, %v1555
        %v1572 = vmul.f32 %v1520, %v1556
        %v1573 = vmul.f32 %v1522, %v1557
        %v1574 = vmul.f32 %v1524, %v1558
        %v1575 = vmul.f32 %v1526, %v1559
        %v1576 = vmul.f32 %v1528, %v1560
        %v1577 = vadd.f32 %v411, %v1561
        %v1578 = vadd.f32 %v412, %v1562
        %v1579 = vadd.f32 %v413, %v1563
        %v1580 = vadd.f32 %v414, %v1564
        %v1581 = vadd.f32 %v415, %v1565
        %v1582 = vadd.f32 %v416, %v1566
        %v1583 = vadd.f32 %v417, %v1567
        %v1584 = vadd.f32 %v418, %v1568
        %v1585 = vadd.f32 %v419, %v1569
        %v1586 = vadd.f32 %v420, %v1570
        %v1587 = vadd.f32 %v421, %v1571
        %v1588 = vadd.f32 %v422, %v1572
        %v1589 = vadd.f32 %v423, %v1573
        %v1590 = vadd.f32 %v424, %v1574
        %v1591 = vadd.f32 %v425, %v1575
        %v1592 = vadd.f32 %v426, %v1576
        %1593 = vst [vmem:[%s406] sm:$0xff] %v1577
        %1594 = vst [vmem:[%s406 + $0x10] sm:$0xff] %v1578
        %1595 = vst [vmem:[%s406 + $0x20] sm:$0xff] %v1579
        %1596 = vst [vmem:[%s406 + $0x30] sm:$0xff] %v1580
        %1597 = vst [vmem:[%s406 + $0x40] sm:$0xff] %v1581
        %1598 = vst [vmem:[%s406 + $0x50] sm:$0xff] %v1582
        %1599 = vst [vmem:[%s406 + $0x60] sm:$0xff] %v1583
        %1600 = vst [vmem:[%s406 + $0x70] sm:$0xff] %v1584
        %1601 = vst [vmem:[%s406 + $0x80] sm:$0xff] %v1585
        %1602 = vst [vmem:[%s406 + $0x90] sm:$0xff] %v1586
        %1603 = vst [vmem:[%s406 + $0xa0] sm:$0xff] %v1587
        %1604 = vst [vmem:[%s406 + $0xb0] sm:$0xff] %v1588
        %1605 = vst [vmem:[%s406 + $0xc0] sm:$0xff] %v1589
        %1606 = vst [vmem:[%s406 + $0xd0] sm:$0xff] %v1590
        %1607 = vst [vmem:[%s406 + $0xe0] sm:$0xff] %v1591
        %1608 = vst [vmem:[%s406 + $0xf0] sm:$0xff] %v1592
        %v1609 = vld [vmem:[#allocation8 + $0x4] sm:$0xf]
        %v1610 = vld [vmem:[#allocation8 + $0xc] sm:$0xf]
        %v1611 = vld [vmem:[#allocation8 + $0x14] sm:$0xf]
        %v1612 = vld [vmem:[#allocation8 + $0x1c] sm:$0xf]
        %v1613 = vld [vmem:[#allocation8 + $0x24] sm:$0xf]
        %v1614 = vld [vmem:[#allocation8 + $0x2c] sm:$0xf]
        %v1615 = vld [vmem:[#allocation8 + $0x34] sm:$0xf]
        %v1616 = vld [vmem:[#allocation8 + $0x3c] sm:$0xf]
        %v1617 = vld [vmem:[#allocation8 + $0x44] sm:$0xf]
        %v1618 = vld [vmem:[#allocation8 + $0x4c] sm:$0xf]
        %v1619 = vld [vmem:[#allocation8 + $0x54] sm:$0xf]
        %v1620 = vld [vmem:[#allocation8 + $0x5c] sm:$0xf]
        %v1621 = vld [vmem:[#allocation8 + $0x64] sm:$0xf]
        %v1622 = vld [vmem:[#allocation8 + $0x6c] sm:$0xf]
        %v1623 = vld [vmem:[#allocation8 + $0x74] sm:$0xf]
        %v1624 = vld [vmem:[#allocation8 + $0x7c] sm:$0xf]
        %v1625 = vld [vmem:[#allocation8 + $0x84] sm:$0xf]
        %v1626 = vld [vmem:[#allocation8 + $0x8c] sm:$0xf]
        %v1627 = vld [vmem:[#allocation8 + $0x94] sm:$0xf]
        %v1628 = vld [vmem:[#allocation8 + $0x9c] sm:$0xf]
        %v1629 = vld [vmem:[#allocation8 + $0xa4] sm:$0xf]
        %v1630 = vld [vmem:[#allocation8 + $0xac] sm:$0xf]
        %v1631 = vld [vmem:[#allocation8 + $0xb4] sm:$0xf]
        %v1632 = vld [vmem:[#allocation8 + $0xbc] sm:$0xf]
        %v1633 = vld [vmem:[#allocation8 + $0xc4] sm:$0xf]
        %v1634 = vld [vmem:[#allocation8 + $0xcc] sm:$0xf]
        %v1635 = vld [vmem:[#allocation8 + $0xd4] sm:$0xf]
        %v1636 = vld [vmem:[#allocation8 + $0xdc] sm:$0xf]
        %v1637 = vld [vmem:[#allocation8 + $0xe4] sm:$0xf]
        %v1638 = vld [vmem:[#allocation8 + $0xec] sm:$0xf]
        %v1639 = vld [vmem:[#allocation8 + $0xf4] sm:$0xf]
        %v1640 = vld [vmem:[#allocation8 + $0xfc] sm:$0xf]
        %v1641 = vld [vmem:[%s6 + $0x1] sm:$0x1]
        %v1643 = vlaneseq
        %v1644 = vshrl.u32 %v1643, 7
        %v1645 = vsub.s32 0, %v1644
        %v1646 = vrot.slane %v1641, %v1645
        %v1680 = vunpack.c.l.b16 %v1609
        %v1681 = vunpack.c.l.b16 %v1610
        %v1682 = vunpack.c.l.b16 %v1611
        %v1683 = vunpack.c.l.b16 %v1612
        %v1684 = vunpack.c.l.b16 %v1613
        %v1685 = vunpack.c.l.b16 %v1614
        %v1686 = vunpack.c.l.b16 %v1615
        %v1687 = vunpack.c.l.b16 %v1616
        %v1688 = vunpack.c.l.b16 %v1617
        %v1689 = vunpack.c.l.b16 %v1618
        %v1690 = vunpack.c.l.b16 %v1619
        %v1691 = vunpack.c.l.b16 %v1620
        %v1692 = vunpack.c.l.b16 %v1621
        %v1693 = vunpack.c.l.b16 %v1622
        %v1694 = vunpack.c.l.b16 %v1623
        %v1695 = vunpack.c.l.b16 %v1624
        %v1696 = vunpack.c.l.b16 %v1625
        %v1697 = vunpack.c.l.b16 %v1626
        %v1698 = vunpack.c.l.b16 %v1627
        %v1699 = vunpack.c.l.b16 %v1628
        %v1700 = vunpack.c.l.b16 %v1629
        %v1701 = vunpack.c.l.b16 %v1630
        %v1702 = vunpack.c.l.b16 %v1631
        %v1703 = vunpack.c.l.b16 %v1632
        %v1704 = vunpack.c.l.b16 %v1633
        %v1705 = vunpack.c.l.b16 %v1634
        %v1706 = vunpack.c.l.b16 %v1635
        %v1707 = vunpack.c.l.b16 %v1636
        %v1708 = vunpack.c.l.b16 %v1637
        %v1709 = vunpack.c.l.b16 %v1638
        %v1710 = vunpack.c.l.b16 %v1639
        %v1711 = vunpack.c.l.b16 %v1640
        %v1712 = vpack.c.b16 %v1681, %v1680
        %v1713 = vpack.c.b16 %v1683, %v1682
        %v1714 = vpack.c.b16 %v1685, %v1684
        %v1715 = vpack.c.b16 %v1687, %v1686
        %v1716 = vpack.c.b16 %v1689, %v1688
        %v1717 = vpack.c.b16 %v1691, %v1690
        %v1718 = vpack.c.b16 %v1693, %v1692
        %v1719 = vpack.c.b16 %v1695, %v1694
        %v1720 = vpack.c.b16 %v1697, %v1696
        %v1721 = vpack.c.b16 %v1699, %v1698
        %v1722 = vpack.c.b16 %v1701, %v1700
        %v1723 = vpack.c.b16 %v1703, %v1702
        %v1724 = vpack.c.b16 %v1705, %v1704
        %v1725 = vpack.c.b16 %v1707, %v1706
        %v1726 = vpack.c.b16 %v1709, %v1708
        %v1727 = vpack.c.b16 %v1711, %v1710
        %1744 = vmatprep.subr.bf16.mxu0 0
        %1745 = vmatpush1.bf16.msra.mxu0 %v1712
        %1746 = vmatprep.subr.bf16.mxu0 0
        %1747 = vmatpush1.bf16.msra.mxu0 %v1713
        %1748 = vmatprep.subr.bf16.mxu0 0
        %1749 = vmatpush1.bf16.msra.mxu0 %v1714
        %1750 = vmatprep.subr.bf16.mxu0 0
        %1751 = vmatpush1.bf16.msra.mxu0 %v1715
        %1752 = vmatprep.subr.bf16.mxu0 0
        %1753 = vmatpush1.bf16.msra.mxu0 %v1716
        %1754 = vmatprep.subr.bf16.mxu0 0
        %1755 = vmatpush1.bf16.msra.mxu0 %v1717
        %1756 = vmatprep.subr.bf16.mxu0 0
        %1757 = vmatpush1.bf16.msra.mxu0 %v1718
        %1758 = vmatprep.subr.bf16.mxu0 0
        %1759 = vmatpush1.bf16.msra.mxu0 %v1719
        %1760 = vmatprep.subr.bf16.mxu0 0
        %1761 = vmatpush1.bf16.msra.mxu0 %v1720
        %1762 = vmatprep.subr.bf16.mxu0 0
        %1763 = vmatpush1.bf16.msra.mxu0 %v1721
        %1764 = vmatprep.subr.bf16.mxu0 0
        %1765 = vmatpush1.bf16.msra.mxu0 %v1722
        %1766 = vmatprep.subr.bf16.mxu0 0
        %1767 = vmatpush1.bf16.msra.mxu0 %v1723
        %1768 = vmatprep.subr.bf16.mxu0 0
        %1769 = vmatpush1.bf16.msra.mxu0 %v1724
        %1770 = vmatprep.subr.bf16.mxu0 0
        %1771 = vmatpush1.bf16.msra.mxu0 %v1725
        %1772 = vmatprep.subr.bf16.mxu0 0
        %1773 = vmatpush1.bf16.msra.mxu0 %v1726
        %1774 = vmatprep.subr.bf16.mxu0 0
        %1775 = vmatpush1.bf16.msra.mxu0 %v1727
        %1776 = vmatprep.mubr.bf16.mxu0 %v954
        %1777 = vmatmul.mubr.bf16.gmra.mrb[0].mxu0 %v953
        %v1778 = vpop.f32.mrb[0].mxu0
        %v1779 = vadd.f32 %v1646, %v1778
        %v1780 = vpop.f32.mrb[0].mxu0
        %v1781 = vpop.f32.mrb[0].mxu0
        %v1782 = vadd.f32 %v1646, %v1781
        %v1783 = vpop.f32.mrb[0].mxu0
        %1784 = vmatprep.mubr.bf16.mxu0 %v956
        %1785 = vmatmul.mubr.bf16.gmra.mrb[0].mxu0 %v955
        %v1786 = vpop.f32.mrb[0].mxu0
        %v1787 = vadd.f32 %v1646, %v1786
        %v1788 = vpop.f32.mrb[0].mxu0
        %v1789 = vpop.f32.mrb[0].mxu0
        %v1790 = vadd.f32 %v1646, %v1789
        %v1791 = vpop.f32.mrb[0].mxu0
        %1792 = vmatprep.mubr.bf16.mxu0 %v958
        %1793 = vmatmul.mubr.bf16.gmra.mrb[0].mxu0 %v957
        %v1794 = vpop.f32.mrb[0].mxu0
        %v1795 = vadd.f32 %v1646, %v1794
        %v1796 = vpop.f32.mrb[0].mxu0
        %v1797 = vpop.f32.mrb[0].mxu0
        %v1798 = vadd.f32 %v1646, %v1797
        %v1799 = vpop.f32.mrb[0].mxu0
        %1800 = vmatprep.mubr.bf16.mxu0 %v960
        %1801 = vmatmul.mubr.bf16.gmra.mrb[0].mxu0 %v959
        %v1802 = vpop.f32.mrb[0].mxu0
        %v1803 = vadd.f32 %v1646, %v1802
        %v1804 = vpop.f32.mrb[0].mxu0
        %v1805 = vpop.f32.mrb[0].mxu0
        %v1806 = vadd.f32 %v1646, %v1805
        %v1807 = vpop.f32.mrb[0].mxu0
        %1808 = vmatprep.mubr.bf16.mxu0 %v962
        %1809 = vmatmul.mubr.bf16.gmra.mrb[0].mxu0 %v961
        %v1810 = vpop.f32.mrb[0].mxu0
        %v1811 = vadd.f32 %v1646, %v1810
        %v1812 = vpop.f32.mrb[0].mxu0
        %v1813 = vpop.f32.mrb[0].mxu0
        %v1814 = vadd.f32 %v1646, %v1813
        %v1815 = vpop.f32.mrb[0].mxu0
        %1816 = vmatprep.mubr.bf16.mxu0 %v964
        %1817 = vmatmul.mubr.bf16.gmra.mrb[0].mxu0 %v963
        %v1818 = vpop.f32.mrb[0].mxu0
        %v1819 = vadd.f32 %v1646, %v1818
        %v1820 = vpop.f32.mrb[0].mxu0
        %v1821 = vpop.f32.mrb[0].mxu0
        %v1822 = vadd.f32 %v1646, %v1821
        %v1823 = vpop.f32.mrb[0].mxu0
        %1824 = vmatprep.mubr.bf16.mxu0 %v966
        %1825 = vmatmul.mubr.bf16.gmra.mrb[0].mxu0 %v965
        %v1826 = vpop.f32.mrb[0].mxu0
        %v1827 = vadd.f32 %v1646, %v1826
        %v1828 = vpop.f32.mrb[0].mxu0
        %v1829 = vpop.f32.mrb[0].mxu0
        %v1830 = vadd.f32 %v1646, %v1829
        %v1831 = vpop.f32.mrb[0].mxu0
        %1832 = vmatprep.mubr.bf16.mxu0 %v968
        %1833 = vmatmul.mubr.bf16.gmra.mrb[0].mxu0 %v967
        %v1834 = vpop.f32.mrb[0].mxu0
        %v1835 = vadd.f32 %v1646, %v1834
        %v1836 = vpop.f32.mrb[0].mxu0
        %v1837 = vpop.f32.mrb[0].mxu0
        %v1838 = vadd.f32 %v1646, %v1837
        %v1839 = vpop.f32.mrb[0].mxu0
        %1840 = vdwg.mxu0
        %v1841 = vld [vmem:[#allocation10 + $0x4] sm:$0xf]
        %v1842 = vld [vmem:[#allocation10 + $0xc] sm:$0xf]
        %v1843 = vld [vmem:[#allocation10 + $0x14] sm:$0xf]
        %v1844 = vld [vmem:[#allocation10 + $0x1c] sm:$0xf]
        %v1845 = vld [vmem:[#allocation10 + $0x24] sm:$0xf]
        %v1846 = vld [vmem:[#allocation10 + $0x2c] sm:$0xf]
        %v1847 = vld [vmem:[#allocation10 + $0x34] sm:$0xf]
        %v1848 = vld [vmem:[#allocation10 + $0x3c] sm:$0xf]
        %v1849 = vld [vmem:[#allocation10 + $0x44] sm:$0xf]
        %v1850 = vld [vmem:[#allocation10 + $0x4c] sm:$0xf]
        %v1851 = vld [vmem:[#allocation10 + $0x54] sm:$0xf]
        %v1852 = vld [vmem:[#allocation10 + $0x5c] sm:$0xf]
        %v1853 = vld [vmem:[#allocation10 + $0x64] sm:$0xf]
        %v1854 = vld [vmem:[#allocation10 + $0x6c] sm:$0xf]
        %v1855 = vld [vmem:[#allocation10 + $0x74] sm:$0xf]
        %v1856 = vld [vmem:[#allocation10 + $0x7c] sm:$0xf]
        %v1857 = vld [vmem:[#allocation10 + $0x84] sm:$0xf]
        %v1858 = vld [vmem:[#allocation10 + $0x8c] sm:$0xf]
        %v1859 = vld [vmem:[#allocation10 + $0x94] sm:$0xf]
        %v1860 = vld [vmem:[#allocation10 + $0x9c] sm:$0xf]
        %v1861 = vld [vmem:[#allocation10 + $0xa4] sm:$0xf]
        %v1862 = vld [vmem:[#allocation10 + $0xac] sm:$0xf]
        %v1863 = vld [vmem:[#allocation10 + $0xb4] sm:$0xf]
        %v1864 = vld [vmem:[#allocation10 + $0xbc] sm:$0xf]
        %v1865 = vld [vmem:[#allocation10 + $0xc4] sm:$0xf]
        %v1866 = vld [vmem:[#allocation10 + $0xcc] sm:$0xf]
        %v1867 = vld [vmem:[#allocation10 + $0xd4] sm:$0xf]
        %v1868 = vld [vmem:[#allocation10 + $0xdc] sm:$0xf]
        %v1869 = vld [vmem:[#allocation10 + $0xe4] sm:$0xf]
        %v1870 = vld [vmem:[#allocation10 + $0xec] sm:$0xf]
        %v1871 = vld [vmem:[#allocation10 + $0xf4] sm:$0xf]
        %v1872 = vld [vmem:[#allocation10 + $0xfc] sm:$0xf]
        %v1873 = vld [vmem:[%s7 + $0x1] sm:$0x1]
        %v1875 = vlaneseq
        %v1876 = vshrl.u32 %v1875, 7
        %v1877 = vsub.s32 0, %v1876
        %v1878 = vrot.slane %v1873, %v1877
        %v1912 = vunpack.c.l.b16 %v1841
        %v1913 = vunpack.c.l.b16 %v1842
        %v1914 = vunpack.c.l.b16 %v1843
        %v1915 = vunpack.c.l.b16 %v1844
        %v1916 = vunpack.c.l.b16 %v1845
        %v1917 = vunpack.c.l.b16 %v1846
        %v1918 = vunpack.c.l.b16 %v1847
        %v1919 = vunpack.c.l.b16 %v1848
        %v1920 = vunpack.c.l.b16 %v1849
        %v1921 = vunpack.c.l.b16 %v1850
        %v1922 = vunpack.c.l.b16 %v1851
        %v1923 = vunpack.c.l.b16 %v1852
        %v1924 = vunpack.c.l.b16 %v1853
        %v1925 = vunpack.c.l.b16 %v1854
        %v1926 = vunpack.c.l.b16 %v1855
        %v1927 = vunpack.c.l.b16 %v1856
        %v1928 = vunpack.c.l.b16 %v1857
        %v1929 = vunpack.c.l.b16 %v1858
        %v1930 = vunpack.c.l.b16 %v1859
        %v1931 = vunpack.c.l.b16 %v1860
        %v1932 = vunpack.c.l.b16 %v1861
        %v1933 = vunpack.c.l.b16 %v1862
        %v1934 = vunpack.c.l.b16 %v1863
        %v1935 = vunpack.c.l.b16 %v1864
        %v1936 = vunpack.c.l.b16 %v1865
        %v1937 = vunpack.c.l.b16 %v1866
        %v1938 = vunpack.c.l.b16 %v1867
        %v1939 = vunpack.c.l.b16 %v1868
        %v1940 = vunpack.c.l.b16 %v1869
        %v1941 = vunpack.c.l.b16 %v1870
        %v1942 = vunpack.c.l.b16 %v1871
        %v1943 = vunpack.c.l.b16 %v1872
        %v1944 = vpack.c.b16 %v1913, %v1912
        %v1945 = vpack.c.b16 %v1915, %v1914
        %v1946 = vpack.c.b16 %v1917, %v1916
        %v1947 = vpack.c.b16 %v1919, %v1918
        %v1948 = vpack.c.b16 %v1921, %v1920
        %v1949 = vpack.c.b16 %v1923, %v1922
        %v1950 = vpack.c.b16 %v1925, %v1924
        %v1951 = vpack.c.b16 %v1927, %v1926
        %v1952 = vpack.c.b16 %v1929, %v1928
        %v1953 = vpack.c.b16 %v1931, %v1930
        %v1954 = vpack.c.b16 %v1933, %v1932
        %v1955 = vpack.c.b16 %v1935, %v1934
        %v1956 = vpack.c.b16 %v1937, %v1936
        %v1957 = vpack.c.b16 %v1939, %v1938
        %v1958 = vpack.c.b16 %v1941, %v1940
        %v1959 = vpack.c.b16 %v1943, %v1942
        %1976 = vmatprep.subr.bf16.mxu0 0
        %1977 = vmatpush1.bf16.msra.mxu0 %v1944
        %1978 = vmatprep.subr.bf16.mxu0 0
        %1979 = vmatpush1.bf16.msra.mxu0 %v1945
        %1980 = vmatprep.subr.bf16.mxu0 0
        %1981 = vmatpush1.bf16.msra.mxu0 %v1946
        %1982 = vmatprep.subr.bf16.mxu0 0
        %1983 = vmatpush1.bf16.msra.mxu0 %v1947
        %1984 = vmatprep.subr.bf16.mxu0 0
        %1985 = vmatpush1.bf16.msra.mxu0 %v1948
        %1986 = vmatprep.subr.bf16.mxu0 0
        %1987 = vmatpush1.bf16.msra.mxu0 %v1949
        %1988 = vmatprep.subr.bf16.mxu0 0
        %1989 = vmatpush1.bf16.msra.mxu0 %v1950
        %1990 = vmatprep.subr.bf16.mxu0 0
        %1991 = vmatpush1.bf16.msra.mxu0 %v1951
        %1992 = vmatprep.subr.bf16.mxu0 0
        %1993 = vmatpush1.bf16.msra.mxu0 %v1952
        %1994 = vmatprep.subr.bf16.mxu0 0
        %1995 = vmatpush1.bf16.msra.mxu0 %v1953
        %1996 = vmatprep.subr.bf16.mxu0 0
        %1997 = vmatpush1.bf16.msra.mxu0 %v1954
        %1998 = vmatprep.subr.bf16.mxu0 0
        %1999 = vmatpush1.bf16.msra.mxu0 %v1955
        %2000 = vmatprep.subr.bf16.mxu0 0
        %2001 = vmatpush1.bf16.msra.mxu0 %v1956
        %2002 = vmatprep.subr.bf16.mxu0 0
        %2003 = vmatpush1.bf16.msra.mxu0 %v1957
        %2004 = vmatprep.subr.bf16.mxu0 0
        %2005 = vmatpush1.bf16.msra.mxu0 %v1958
        %2006 = vmatprep.subr.bf16.mxu0 0
        %2007 = vmatpush1.bf16.msra.mxu0 %v1959
        %2008 = vmatprep.mubr.bf16.mxu0 %v954
        %2009 = vmatmul.mubr.bf16.gmra.mrb[0].mxu0 %v953
        %v2010 = vpop.f32.mrb[0].mxu0
        %v2011 = vadd.f32 %v1878, %v2010
        %v2012 = vpop.f32.mrb[0].mxu0
        %v2013 = vpop.f32.mrb[0].mxu0
        %v2014 = vadd.f32 %v1878, %v2013
        %v2015 = vpop.f32.mrb[0].mxu0
        %2016 = vmatprep.mubr.bf16.mxu0 %v956
        %2017 = vmatmul.mubr.bf16.gmra.mrb[0].mxu0 %v955
        %v2018 = vpop.f32.mrb[0].mxu0
        %v2019 = vadd.f32 %v1878, %v2018
        %v2020 = vpop.f32.mrb[0].mxu0
        %v2021 = vpop.f32.mrb[0].mxu0
        %v2022 = vadd.f32 %v1878, %v2021
        %v2023 = vpop.f32.mrb[0].mxu0
        %2024 = vmatprep.mubr.bf16.mxu0 %v958
        %2025 = vmatmul.mubr.bf16.gmra.mrb[0].mxu0 %v957
        %v2026 = vpop.f32.mrb[0].mxu0
        %v2027 = vadd.f32 %v1878, %v2026
        %v2028 = vpop.f32.mrb[0].mxu0
        %v2029 = vpop.f32.mrb[0].mxu0
        %v2030 = vadd.f32 %v1878, %v2029
        %v2031 = vpop.f32.mrb[0].mxu0
        %2032 = vmatprep.mubr.bf16.mxu0 %v960
        %2033 = vmatmul.mubr.bf16.gmra.mrb[0].mxu0 %v959
        %v2034 = vpop.f32.mrb[0].mxu0
        %v2035 = vadd.f32 %v1878, %v2034
        %v2036 = vpop.f32.mrb[0].mxu0
        %v2037 = vpop.f32.mrb[0].mxu0
        %v2038 = vadd.f32 %v1878, %v2037
        %v2039 = vpop.f32.mrb[0].mxu0
        %2040 = vmatprep.mubr.bf16.mxu0 %v962
        %2041 = vmatmul.mubr.bf16.gmra.mrb[0].mxu0 %v961
        %v2042 = vpop.f32.mrb[0].mxu0
        %v2043 = vadd.f32 %v1878, %v2042
        %v2044 = vpop.f32.mrb[0].mxu0
        %v2045 = vpop.f32.mrb[0].mxu0
        %v2046 = vadd.f32 %v1878, %v2045
        %v2047 = vpop.f32.mrb[0].mxu0
        %2048 = vmatprep.mubr.bf16.mxu0 %v964
        %2049 = vmatmul.mubr.bf16.gmra.mrb[0].mxu0 %v963
        %v2050 = vpop.f32.mrb[0].mxu0
        %v2051 = vadd.f32 %v1878, %v2050
        %v2052 = vpop.f32.mrb[0].mxu0
        %v2053 = vpop.f32.mrb[0].mxu0
        %v2054 = vadd.f32 %v1878, %v2053
        %v2055 = vpop.f32.mrb[0].mxu0
        %2056 = vmatprep.mubr.bf16.mxu0 %v966
        %2057 = vmatmul.mubr.bf16.gmra.mrb[0].mxu0 %v965
        %v2058 = vpop.f32.mrb[0].mxu0
        %v2059 = vadd.f32 %v1878, %v2058
        %v2060 = vpop.f32.mrb[0].mxu0
        %v2061 = vpop.f32.mrb[0].mxu0
        %v2062 = vadd.f32 %v1878, %v2061
        %v2063 = vpop.f32.mrb[0].mxu0
        %2064 = vmatprep.mubr.bf16.mxu0 %v968
        %2065 = vmatmul.mubr.bf16.gmra.mrb[0].mxu0 %v967
        %v2066 = vpop.f32.mrb[0].mxu0
        %v2067 = vadd.f32 %v1878, %v2066
        %v2068 = vpop.f32.mrb[0].mxu0
        %v2069 = vpop.f32.mrb[0].mxu0
        %v2070 = vadd.f32 %v1878, %v2069
        %v2071 = vpop.f32.mrb[0].mxu0
        %2072 = vdwg.mxu0
        %v2073 = vxor.u32 %v1779, 2147483648
        %v2074 = vxor.u32 %v1782, 2147483648
        %v2075 = vxor.u32 %v1787, 2147483648
        %v2076 = vxor.u32 %v1790, 2147483648
        %v2077 = vxor.u32 %v1795, 2147483648
        %v2078 = vxor.u32 %v1798, 2147483648
        %v2079 = vxor.u32 %v1803, 2147483648
        %v2080 = vxor.u32 %v1806, 2147483648
        %v2081 = vxor.u32 %v1811, 2147483648
        %v2082 = vxor.u32 %v1814, 2147483648
        %v2083 = vxor.u32 %v1819, 2147483648
        %v2084 = vxor.u32 %v1822, 2147483648
        %v2085 = vxor.u32 %v1827, 2147483648
        %v2086 = vxor.u32 %v1830, 2147483648
        %v2087 = vxor.u32 %v1835, 2147483648
        %v2088 = vxor.u32 %v1838, 2147483648
        %v2089 = vmul.f32 %v2073, 1.442695
        %v2090 = vpow.pop %v2089
        %v2091 = vmul.f32 %v2074, 1.442695
        %v2092 = vpow.pop %v2091
        %v2093 = vmul.f32 %v2075, 1.442695
        %v2094 = vpow.pop %v2093
        %v2095 = vmul.f32 %v2076, 1.442695
        %v2096 = vpow.pop %v2095
        %v2097 = vmul.f32 %v2077, 1.442695
        %v2098 = vpow.pop %v2097
        %v2099 = vmul.f32 %v2078, 1.442695
        %v2100 = vpow.pop %v2099
        %v2101 = vmul.f32 %v2079, 1.442695
        %v2102 = vpow.pop %v2101
        %v2103 = vmul.f32 %v2080, 1.442695
        %v2104 = vpow.pop %v2103
        %v2105 = vmul.f32 %v2081, 1.442695
        %v2106 = vpow.pop %v2105
        %v2107 = vmul.f32 %v2082, 1.442695
        %v2108 = vpow.pop %v2107
        %v2109 = vmul.f32 %v2083, 1.442695
        %v2110 = vpow.pop %v2109
        %v2111 = vmul.f32 %v2084, 1.442695
        %v2112 = vpow.pop %v2111
        %v2113 = vmul.f32 %v2085, 1.442695
        %v2114 = vpow.pop %v2113
        %v2115 = vmul.f32 %v2086, 1.442695
        %v2116 = vpow.pop %v2115
        %v2117 = vmul.f32 %v2087, 1.442695
        %v2118 = vpow.pop %v2117
        %v2119 = vmul.f32 %v2088, 1.442695
        %v2120 = vpow.pop %v2119
        %v2121 = vadd.f32 %v2090, 1.0
        %v2122 = vadd.f32 %v2092, 1.0
        %v2123 = vadd.f32 %v2094, 1.0
        %v2124 = vadd.f32 %v2096, 1.0
        %v2125 = vadd.f32 %v2098, 1.0
        %v2126 = vadd.f32 %v2100, 1.0
        %v2127 = vadd.f32 %v2102, 1.0
        %v2128 = vadd.f32 %v2104, 1.0
        %v2129 = vadd.f32 %v2106, 1.0
        %v2130 = vadd.f32 %v2108, 1.0
        %v2131 = vadd.f32 %v2110, 1.0
        %v2132 = vadd.f32 %v2112, 1.0
        %v2133 = vadd.f32 %v2114, 1.0
        %v2134 = vadd.f32 %v2116, 1.0
        %v2135 = vadd.f32 %v2118, 1.0
        %v2136 = vadd.f32 %v2120, 1.0
        %v2137 = vrcp.pop %v2121
        %v2138 = vmul.f32 1.0, %v2137
        %v2139 = vrcp.pop %v2122
        %v2140 = vmul.f32 1.0, %v2139
        %v2141 = vrcp.pop %v2123
        %v2142 = vmul.f32 1.0, %v2141
        %v2143 = vrcp.pop %v2124
        %v2144 = vmul.f32 1.0, %v2143
        %v2145 = vrcp.pop %v2125
        %v2146 = vmul.f32 1.0, %v2145
        %v2147 = vrcp.pop %v2126
        %v2148 = vmul.f32 1.0, %v2147
        %v2149 = vrcp.pop %v2127
        %v2150 = vmul.f32 1.0, %v2149
        %v2151 = vrcp.pop %v2128
        %v2152 = vmul.f32 1.0, %v2151
        %v2153 = vrcp.pop %v2129
        %v2154 = vmul.f32 1.0, %v2153
        %v2155 = vrcp.pop %v2130
        %v2156 = vmul.f32 1.0, %v2155
        %v2157 = vrcp.pop %v2131
        %v2158 = vmul.f32 1.0, %v2157
        %v2159 = vrcp.pop %v2132
        %v2160 = vmul.f32 1.0, %v2159
        %v2161 = vrcp.pop %v2133
        %v2162 = vmul.f32 1.0, %v2161
        %v2163 = vrcp.pop %v2134
        %v2164 = vmul.f32 1.0, %v2163
        %v2165 = vrcp.pop %v2135
        %v2166 = vmul.f32 1.0, %v2165
        %v2167 = vrcp.pop %v2136
        %v2168 = vmul.f32 1.0, %v2167
        %v2169 = vtanh.pop %v2011
        %v2170 = vtanh.pop %v2014
        %v2171 = vtanh.pop %v2019
        %v2172 = vtanh.pop %v2022
        %v2173 = vtanh.pop %v2027
        %v2174 = vtanh.pop %v2030
        %v2175 = vtanh.pop %v2035
        %v2176 = vtanh.pop %v2038
        %v2177 = vtanh.pop %v2043
        %v2178 = vtanh.pop %v2046
        %v2179 = vtanh.pop %v2051
        %v2180 = vtanh.pop %v2054
        %v2181 = vtanh.pop %v2059
        %v2182 = vtanh.pop %v2062
        %v2183 = vtanh.pop %v2067
        %v2184 = vtanh.pop %v2070
        %v2185 = vsub.f32 %v2169, %v411
        %v2186 = vsub.f32 %v2170, %v412
        %v2187 = vsub.f32 %v2171, %v413
        %v2188 = vsub.f32 %v2172, %v414
        %v2189 = vsub.f32 %v2173, %v415
        %v2190 = vsub.f32 %v2174, %v416
        %v2191 = vsub.f32 %v2175, %v417
        %v2192 = vsub.f32 %v2176, %v418
        %v2193 = vsub.f32 %v2177, %v419
        %v2194 = vsub.f32 %v2178, %v420
        %v2195 = vsub.f32 %v2179, %v421
        %v2196 = vsub.f32 %v2180, %v422
        %v2197 = vsub.f32 %v2181, %v423
        %v2198 = vsub.f32 %v2182, %v424
        %v2199 = vsub.f32 %v2183, %v425
        %v2200 = vsub.f32 %v2184, %v426
        %v2201 = vmul.f32 %v2138, %v2185
        %v2202 = vmul.f32 %v2140, %v2186
        %v2203 = vmul.f32 %v2142, %v2187
        %v2204 = vmul.f32 %v2144, %v2188
        %v2205 = vmul.f32 %v2146, %v2189
        %v2206 = vmul.f32 %v2148, %v2190
        %v2207 = vmul.f32 %v2150, %v2191
        %v2208 = vmul.f32 %v2152, %v2192
        %v2209 = vmul.f32 %v2154, %v2193
        %v2210 = vmul.f32 %v2156, %v2194
        %v2211 = vmul.f32 %v2158, %v2195
        %v2212 = vmul.f32 %v2160, %v2196
        %v2213 = vmul.f32 %v2162, %v2197
        %v2214 = vmul.f32 %v2164, %v2198
        %v2215 = vmul.f32 %v2166, %v2199
        %v2216 = vmul.f32 %v2168, %v2200
        %v2217 = vadd.f32 %v411, %v2201
        %v2218 = vadd.f32 %v412, %v2202
        %v2219 = vadd.f32 %v413, %v2203
        %v2220 = vadd.f32 %v414, %v2204
        %v2221 = vadd.f32 %v415, %v2205
        %v2222 = vadd.f32 %v416, %v2206
        %v2223 = vadd.f32 %v417, %v2207
        %v2224 = vadd.f32 %v418, %v2208
        %v2225 = vadd.f32 %v419, %v2209
        %v2226 = vadd.f32 %v420, %v2210
        %v2227 = vadd.f32 %v421, %v2211
        %v2228 = vadd.f32 %v422, %v2212
        %v2229 = vadd.f32 %v423, %v2213
        %v2230 = vadd.f32 %v424, %v2214
        %v2231 = vadd.f32 %v425, %v2215
        %v2232 = vadd.f32 %v426, %v2216
        %2233 = vst [vmem:[%s406 + $0x8] sm:$0xff] %v2217
        %2234 = vst [vmem:[%s406 + $0x18] sm:$0xff] %v2218
        %2235 = vst [vmem:[%s406 + $0x28] sm:$0xff] %v2219
        %2236 = vst [vmem:[%s406 + $0x38] sm:$0xff] %v2220
        %2237 = vst [vmem:[%s406 + $0x48] sm:$0xff] %v2221
        %2238 = vst [vmem:[%s406 + $0x58] sm:$0xff] %v2222
        %2239 = vst [vmem:[%s406 + $0x68] sm:$0xff] %v2223
        %2240 = vst [vmem:[%s406 + $0x78] sm:$0xff] %v2224
        %2241 = vst [vmem:[%s406 + $0x88] sm:$0xff] %v2225
        %2242 = vst [vmem:[%s406 + $0x98] sm:$0xff] %v2226
        %2243 = vst [vmem:[%s406 + $0xa8] sm:$0xff] %v2227
        %2244 = vst [vmem:[%s406 + $0xb8] sm:$0xff] %v2228
        %2245 = vst [vmem:[%s406 + $0xc8] sm:$0xff] %v2229
        %2246 = vst [vmem:[%s406 + $0xd8] sm:$0xff] %v2230
        %2247 = vst [vmem:[%s406 + $0xe8] sm:$0xff] %v2231
        %2248 = vst [vmem:[%s406 + $0xf8] sm:$0xff] %v2232
        %s2249 = sand.u32 %s215, 1
        %s2250 = scalar_lea.sflag [#allocation4], %s2249
        %s2251 = sand.u32 %s215, 1
        %s2252 = smul.addr %s2251, 256
        %s2253 = scalar_lea.vmem [#allocation11], %s2252
        // Predicated region
        $region73: #{tpu_custom_call.1} parent=51 // pred_check
          %p2254 = pneg %p225
        $region74: #{tpu_custom_call.1} parent=51 // pred_check_branch
          %2256 = sbr.rel (%p2254) target = $region76
        $region75: #{tpu_custom_call.1} parent=51 // pred_region
          %s2257 = smul.u32 16, %s29
          %s2259 = ssub.s32 4096, 4096
          %2260 = vsyncadd %s2250, %s2259
          %s2261 = smul.addr %s2257, 2
          %s2262 = smul.addr %s2261, 128
          %s2263 = scalar_lea.hbm %s8, %s2262
          %s2264 = sshll.u32 %s2253, 4
          %s2265 = int_to_ptr.vmem [resolvable:$true] %s2264
          %2270 = dma.vmem_to_hbm [thread:$0]  %s2265, 4096, %s2263, %s2250, 256, 256, 16
        $region76: #{tpu_custom_call.1} parent=51 // pred_fallthru
          _
      $region52: #{tpu_custom_call.1} parent=5 // pred_fallthru
        _
      %p2271 = scmp.le.s32.totalorder 2, %s24
      // Predicated region
      $region77: #{tpu_custom_call.1} parent=5 // pred_check
        %p2272 = pneg %p2271
      $region78: #{tpu_custom_call.1} parent=5 // pred_check_branch
        %2274 = sbr.rel (%p2272) target = $region80
      $region79: #{tpu_custom_call.1} parent=5 // pred_region
        %s2275 = ssub.s32 %s24, 2
        // Predicated region
        $region81: #{tpu_custom_call.1} parent=79 // pred_check
          %p2276 = pneg %p231
        $region82: #{tpu_custom_call.1} parent=79 // pred_check_branch
          %2278 = sbr.rel (%p2276) target = $region84
        $region83: #{tpu_custom_call.1} parent=79 // pred_region
          %s2279 = sand.u32 %s216, 1
          %s2280 = scalar_lea.sflag [#allocation4], %s2279
          %s2281 = sand.u32 %s216, 1
          %s2282 = smul.addr %s2281, 256
          %s2283 = scalar_lea.vmem [#allocation11], %s2282
          %2284 = dma.done %s2280, 4096
        $region84: #{tpu_custom_call.1} parent=79 // pred_fallthru
          _
      $region80: #{tpu_custom_call.1} parent=5 // pred_fallthru
        _
    $region6: #{tpu_custom_call.1} parent=1 // loop_footer
      %s28 = sadd.s32 1, %s24
    $region7: #{tpu_custom_call.1} parent=1 // loop_footer_branch
      %23 = sbr.rel target = $region3
    $region8: #{tpu_custom_call.1} parent=1 // loop_exit
      _
    %2285 = vsyncpa [#allocation3], 1
    %s2286 = scalar_lea.sflag [#allocation3], 1
    %2287 = vsyncpa %s2286, 1
    %2288 = vsyncpa [#allocation6], 1
    %s2289 = scalar_lea.sflag [#allocation6], 1
    %2290 = vsyncpa %s2289, 1
    %2291 = vsyncpa [#allocation9], 1
    %2292 = vsyncpa [#allocation4], 1
    %s2293 = scalar_lea.sflag [#allocation4], 1
    %2294 = vsyncpa %s2293, 1

</llo_original>
